<compile_context>
chip_gen: v7x
topology: tpu7x:2x2x1
jax: 0.10.0
libtpu: 0.0.40
codegen_flags: <defaults>
</compile_context>

<pallas_src>
import jax
import jax.numpy as jnp
from jax.experimental import pallas as pl
from jax.experimental.pallas import tpu as pltpu


def _round_up(n, m=128):
    return ((n + m - 1) // m) * m


def bottleneck_kernel(x_ref, w1_ref, t1_ref, w2_ref, t2_ref, w3_ref, t3_ref,
                      out_ref):
    _, H, W, Cp = x_ref.shape
    Pp = w1_ref.shape[1]
    HW = H * W
    bf16 = jnp.bfloat16

    # ---- conv1 (1x1) + bn1 + relu  (BN scale pre-folded into w1) ----------
    xb = x_ref[0].reshape(HW, Cp).astype(bf16)
    h1 = jnp.dot(xb, w1_ref[...], preferred_element_type=jnp.float32)
    h1 = jnp.maximum(h1 + t1_ref[...], 0.0)                  # (HW, Pp) f32

    # ---- conv2 (3x3, pad=1, stride=1) as ONE im2col matmul, K = 9*Pp ------
    # Edge masks for the rolled taps.
    flat_i = jax.lax.broadcasted_iota(jnp.int32, (HW, Pp), 0)          # row id
    col = jnp.broadcast_to(
        jax.lax.broadcasted_iota(jnp.int32, (W, Pp), 0)[None, :, :],
        (H, W, Pp)).reshape(HW, Pp)                                    # x coord
    zero = jnp.zeros_like(h1)

    # dx = -1 / +1 taps: sublane roll of the flat activation + column mask.
    q_m = jnp.where(col != 0,     pltpu.roll(h1, shift=1,      axis=0), zero)
    q_p = jnp.where(col != W - 1, pltpu.roll(h1, shift=HW - 1, axis=0), zero)
    q = {-1: q_m, 0: h1, 1: q_p}

    def shift_rows(a, dy):                                    # dy in {-1,0,+1}
        if dy == 0:
            return a
        if dy == -1:      # need row y-1; zero out y == 0 (flat rows < W)
            return jnp.where(flat_i >= W,
                             pltpu.roll(a, shift=W, axis=0), zero)
        # dy == +1: need row y+1; zero out y == H-1 (flat rows >= HW - W)
        return jnp.where(flat_i < HW - W,
                         pltpu.roll(a, shift=HW - W, axis=0), zero)

    # (ky, kx, cin)-ordered patch matrix, matching w2's (kh, kw, cin) rows.
    patches = [shift_rows(q[dx], dy) for dy in (-1, 0, 1) for dx in (-1, 0, 1)]
    im2col = jnp.concatenate(patches, axis=-1).astype(bf16)   # (HW, 9*Pp)

    h2 = jnp.dot(im2col, w2_ref[...], preferred_element_type=jnp.float32)
    h2 = jnp.maximum(h2 + t2_ref[...], 0.0)                   # (HW, Pp) f32

    # ---- conv3 (1x1) + bn3 + residual add (no final relu) -----------------
    h3 = jnp.dot(h2.astype(bf16), w3_ref[...],
                 preferred_element_type=jnp.float32) + t3_ref[...]
    out_ref[0] = (h3.reshape(H, W, Cp) + x_ref[0]).astype(out_ref.dtype)


def _bn_scale_shift(conv_bias, bn_stats, eps=1e-5):
    gamma, beta, mean, var = bn_stats
    scale = gamma / jnp.sqrt(var + eps)
    shift = beta + (conv_bias - mean) * scale
    return scale, shift


def bottleneck_forward(x_nchw, params):
    N, Cin, H, W = x_nchw.shape
    P = params['w2'].shape[0]              # planes
    Cout = params['w3'].shape[0]           # planes * expansion
    assert Cout == Cin, "downsample=None requires in_planes == planes * 4"

    Cp = _round_up(Cin)                    # lane-dense channel padding
    Pp = _round_up(P)

    s1, t1 = _bn_scale_shift(params['b1'], params['bn1'])
    s2, t2 = _bn_scale_shift(params['b2'], params['bn2'])
    s3, t3 = _bn_scale_shift(params['b3'], params['bn3'])

    # PyTorch conv weights are (Cout, Cin, kh, kw); fold BN scale into the
    # output channels, pad to lane-dense sizes, cast to bf16 for the MXU.
    w1 = params['w1'][:, :, 0, 0].T * s1[None, :]                     # (Cin, P)
    w1 = jnp.pad(w1, ((0, Cp - Cin), (0, Pp - P))).astype(jnp.bfloat16)
    t1p = jnp.pad(t1, (0, Pp - P)).reshape(1, Pp).astype(jnp.float32)

    w2 = jnp.transpose(params['w2'], (2, 3, 1, 0)) * s2[None, None, None, :]
    w2 = jnp.pad(w2, ((0, 0), (0, 0), (0, Pp - P), (0, Pp - P)))
    w2 = w2.reshape(9 * Pp, Pp).astype(jnp.bfloat16)                  # im2col W
    t2p = jnp.pad(t2, (0, Pp - P)).reshape(1, Pp).astype(jnp.float32)

    w3 = params['w3'][:, :, 0, 0].T * s3[None, :]                     # (P, Cout)
    w3 = jnp.pad(w3, ((0, Pp - P), (0, Cp - Cout))).astype(jnp.bfloat16)
    t3p = jnp.pad(t3, (0, Cp - Cout)).reshape(1, Cp).astype(jnp.float32)

    # NCHW -> NHWC, f32 (kept f32 for an exact residual add), channel-padded.
    x = jnp.transpose(x_nchw, (0, 2, 3, 1)).astype(jnp.float32)
    x = jnp.pad(x, ((0, 0), (0, 0), (0, 0), (0, Cp - Cin)))

    # Explicit VMEM budget (double-buffered blocks + weights + live values).
    x_blk = H * W * Cp * 4
    w_bytes = (w1.size + w2.size + w3.size) * 2 \
        + (t1p.size + t2p.size + t3p.size) * 4
    live = 13 * H * W * Pp * 4 + H * W * 9 * Pp * (4 + 2)
    est = 2 * (2 * x_blk) + 2 * w_bytes + live
    vmem_limit = int(min(64 * 2**20, max(16 * 2**20, 2 * est)))

    out = pl.pallas_call(
        bottleneck_kernel,
        out_shape=jax.ShapeDtypeStruct((N, H, W, Cp), jnp.float32),
        grid_spec=pltpu.PrefetchScalarGridSpec(
            num_scalar_prefetch=0,
            grid=(N,),
            in_specs=[
                pl.BlockSpec((1, H, W, Cp), lambda b: (b, 0, 0, 0)),
                pl.BlockSpec((Cp, Pp), lambda b: (0, 0)),
                pl.BlockSpec((1, Pp), lambda b: (0, 0)),
                pl.BlockSpec((9 * Pp, Pp), lambda b: (0, 0)),
                pl.BlockSpec((1, Pp), lambda b: (0, 0)),
                pl.BlockSpec((Pp, Cp), lambda b: (0, 0)),
                pl.BlockSpec((1, Cp), lambda b: (0, 0)),
            ],
            out_specs=pl.BlockSpec((1, H, W, Cp), lambda b: (b, 0, 0, 0)),
        ),
        compiler_params=pltpu.CompilerParams(
            dimension_semantics=("parallel",),
            vmem_limit_bytes=vmem_limit),
    )(x, w1, t1p, w2, t2p, w3, t3p)

    out = out[..., :Cout]                                      # drop lane pad
    return jnp.transpose(out, (0, 3, 1, 2))                    # back to NCHW


def ref_bottleneck(x, p):
    """Pure-JAX NCHW f32 reference (lax conv), for correctness checking."""
    eps = 1e-5

    def conv(y, w, b, pad):
        y = jax.lax.conv_general_dilated(
            y, w, (1, 1), pad, dimension_numbers=('NCHW', 'OIHW', 'NCHW'))
        return y + b[None, :, None, None]

    def bn(y, stats):
        g, be, m, v = stats
        return (g[None, :, None, None] * (y - m[None, :, None, None])
                / jnp.sqrt(v[None, :, None, None] + eps)
                + be[None, :, None, None])

    out = jax.nn.relu(bn(conv(x, p['w1'], p['b1'], 'VALID'), p['bn1']))
    out = jax.nn.relu(bn(conv(out, p['w2'], p['b2'], ((1, 1), (1, 1))), p['bn2']))
    out = bn(conv(out, p['w3'], p['b3'], 'VALID'), p['bn3'])
    return out + x


if __name__ == "__main__":
    key = jax.random.PRNGKey(0)
    ks = jax.random.split(key, 20)

    N, in_planes, planes, H, W = 2, 16, 4, 8, 8
    expansion = 4
    out_planes = planes * expansion        # == in_planes (downsample=None)

    def bn_params(k0, k1, k2, k3, c):
        return (1.0 + 0.1 * jax.random.normal(k0, (c,), jnp.float32),   # gamma
                0.1 * jax.random.normal(k1, (c,), jnp.float32),          # beta
                0.1 * jax.random.normal(k2, (c,), jnp.float32),          # mean
                jax.random.uniform(k3, (c,), jnp.float32, 0.5, 1.5))     # var

    x = jax.random.normal(ks[0], (N, in_planes, H, W), jnp.float32)
    params = {
        'w1': 0.2 * jax.random.normal(ks[1], (planes, in_planes, 1, 1), jnp.float32),
        'b1': 0.1 * jax.random.normal(ks[2], (planes,), jnp.float32),
        'bn1': bn_params(ks[3], ks[4], ks[5], ks[6], planes),
        'w2': 0.2 * jax.random.normal(ks[7], (planes, planes, 3, 3), jnp.float32),
        'b2': 0.1 * jax.random.normal(ks[8], (planes,), jnp.float32),
        'bn2': bn_params(ks[9], ks[10], ks[11], ks[12], planes),
        'w3': 0.2 * jax.random.normal(ks[13], (out_planes, planes, 1, 1), jnp.float32),
        'b3': 0.1 * jax.random.normal(ks[14], (out_planes,), jnp.float32),
        'bn3': bn_params(ks[15], ks[16], ks[17], ks[18], out_planes),
    }

    out = bottleneck_forward(x, params)
    out = jax.block_until_ready(out)

    ref = ref_bottleneck(x, params)
    assert out.shape == x.shape, (out.shape, x.shape)
    max_err = float(jnp.max(jnp.abs(out - ref)))
    # bf16 MXU operands with f32 accumulation -> a few 1e-3 of absolute error.
    assert max_err < 5e-2, f"max abs error {max_err}"

    print("KERNEL_OK")
</pallas_src>

<mosaic_0001>
module attributes {stable_mosaic.version = 11 : i64} {
  func.func @bottleneck_kernel(%arg0: i32, %arg1: memref<1x8x8x128xf32, #tpu.memory_space<vmem>>, %arg2: memref<128x128xbf16, #tpu.memory_space<vmem>>, %arg3: memref<1x128xf32, #tpu.memory_space<vmem>>, %arg4: memref<1152x128xbf16, #tpu.memory_space<vmem>>, %arg5: memref<1x128xf32, #tpu.memory_space<vmem>>, %arg6: memref<128x128xbf16, #tpu.memory_space<vmem>>, %arg7: memref<1x128xf32, #tpu.memory_space<vmem>>, %arg8: memref<1x8x8x128xf32, #tpu.memory_space<vmem>>) attributes {dimension_semantics = [#tpu.dimension_semantics<parallel>], iteration_bounds = array<i64: 2>, scalar_prefetch = 0 : i64, scratch_operands = 0 : i64, tpu.core_type = #tpu.core_type<tc>, window_params = [{transform_indices = @transform_0, window_bounds = array<i64: 1, 8, 8, 128>}, {pipeline_mode = #tpu.pipeline_mode<synchronous>, transform_indices = @transform_1, window_bounds = array<i64: 128, 128>}, {pipeline_mode = #tpu.pipeline_mode<synchronous>, transform_indices = @transform_2, window_bounds = array<i64: 1, 128>}, {pipeline_mode = #tpu.pipeline_mode<synchronous>, transform_indices = @transform_3, window_bounds = array<i64: 1152, 128>}, {pipeline_mode = #tpu.pipeline_mode<synchronous>, transform_indices = @transform_4, window_bounds = array<i64: 1, 128>}, {pipeline_mode = #tpu.pipeline_mode<synchronous>, transform_indices = @transform_5, window_bounds = array<i64: 128, 128>}, {pipeline_mode = #tpu.pipeline_mode<synchronous>, transform_indices = @transform_6, window_bounds = array<i64: 1, 128>}, {transform_indices = @transform_7, window_bounds = array<i64: 1, 8, 8, 128>}]} {
    %c0 = arith.constant 0 : index
    %c0_0 = arith.constant 0 : index
    %c0_1 = arith.constant 0 : index
    %c0_2 = arith.constant 0 : index
    %0 = vector.load %arg1[%c0, %c0_0, %c0_1, %c0_2] : memref<1x8x8x128xf32, #tpu.memory_space<vmem>>, vector<1x8x8x128xf32>
    %1 = vector.shape_cast %0 : vector<1x8x8x128xf32> to vector<8x8x128xf32>
    %2 = vector.shape_cast %1 : vector<8x8x128xf32> to vector<64x128xf32>
    %3 = arith.truncf %2 : vector<64x128xf32> to vector<64x128xbf16>
    %c0_3 = arith.constant 0 : index
    %c0_4 = arith.constant 0 : index
    %4 = vector.load %arg2[%c0_3, %c0_4] : memref<128x128xbf16, #tpu.memory_space<vmem>>, vector<128x128xbf16>
    %cst = arith.constant dense<0.000000e+00> : vector<64x128xf32>
    %5 = tpu.matmul %3, %4, %cst {dimension_numbers = #tpu.dot_dimension_numbers<[1], [0], [0], [1], [0, 0, 1, 1], [], []>} : vector<64x128xbf16>, vector<128x128xbf16>, vector<64x128xf32> -> vector<64x128xf32>
    %c0_5 = arith.constant 0 : index
    %c0_6 = arith.constant 0 : index
    %6 = vector.load %arg3[%c0_5, %c0_6] : memref<1x128xf32, #tpu.memory_space<vmem>>, vector<1x128xf32>
    %7 = vector.broadcast %6 : vector<1x128xf32> to vector<64x128xf32>
    %8 = arith.addf %5, %7 : vector<64x128xf32>
    %cst_7 = arith.constant 0.000000e+00 : f32
    %9 = vector.broadcast %cst_7 : f32 to vector<64x128xf32>
    %10 = arith.maximumf %8, %9 : vector<64x128xf32>
    %11 = tpu.iota {dimensions = array<i32: 0>} : vector<64x128xi32>
    %12 = tpu.iota {dimensions = array<i32: 0>} : vector<8x128xi32>
    %13 = vector.shape_cast %12 : vector<8x128xi32> to vector<1x8x128xi32>
    %14 = vector.shape_cast %13 : vector<1x8x128xi32> to vector<1x8x128xi32>
    %15 = vector.broadcast %14 : vector<1x8x128xi32> to vector<8x8x128xi32>
    %16 = vector.shape_cast %15 : vector<8x8x128xi32> to vector<64x128xi32>
    %cst_8 = arith.constant 0.000000e+00 : f32
    %17 = vector.broadcast %cst_8 : f32 to vector<64x128xf32>
    %c0_i32 = arith.constant 0 : i32
    %18 = vector.broadcast %c0_i32 : i32 to vector<64x128xi32>
    %19 = arith.cmpi ne, %16, %18 : vector<64x128xi32>
    %c1_i32 = arith.constant 1 : i32
    %20 = tpu.dynamic_rotate %10 by %c1_i32 dim 0 : vector<64x128xf32>, i32 -> vector<64x128xf32>
    %21 = arith.select %19, %20, %17 : vector<64x128xi1>, vector<64x128xf32>
    %c7_i32 = arith.constant 7 : i32
    %22 = vector.broadcast %c7_i32 : i32 to vector<64x128xi32>
    %23 = arith.cmpi ne, %16, %22 : vector<64x128xi32>
    %c63_i32 = arith.constant 63 : i32
    %24 = tpu.dynamic_rotate %10 by %c63_i32 dim 0 : vector<64x128xf32>, i32 -> vector<64x128xf32>
    %25 = arith.select %23, %24, %17 : vector<64x128xi1>, vector<64x128xf32>
    %c8_i32 = arith.constant 8 : i32
    %26 = vector.broadcast %c8_i32 : i32 to vector<64x128xi32>
    %27 = arith.cmpi sge, %11, %26 : vector<64x128xi32>
    %c8_i32_9 = arith.constant 8 : i32
    %28 = tpu.dynamic_rotate %21 by %c8_i32_9 dim 0 : vector<64x128xf32>, i32 -> vector<64x128xf32>
    %29 = arith.select %27, %28, %17 : vector<64x128xi1>, vector<64x128xf32>
    %c8_i32_10 = arith.constant 8 : i32
    %30 = vector.broadcast %c8_i32_10 : i32 to vector<64x128xi32>
    %31 = arith.cmpi sge, %11, %30 : vector<64x128xi32>
    %c8_i32_11 = arith.constant 8 : i32
    %32 = tpu.dynamic_rotate %10 by %c8_i32_11 dim 0 : vector<64x128xf32>, i32 -> vector<64x128xf32>
    %33 = arith.select %31, %32, %17 : vector<64x128xi1>, vector<64x128xf32>
    %c8_i32_12 = arith.constant 8 : i32
    %34 = vector.broadcast %c8_i32_12 : i32 to vector<64x128xi32>
    %35 = arith.cmpi sge, %11, %34 : vector<64x128xi32>
    %c8_i32_13 = arith.constant 8 : i32
    %36 = tpu.dynamic_rotate %25 by %c8_i32_13 dim 0 : vector<64x128xf32>, i32 -> vector<64x128xf32>
    %37 = arith.select %35, %36, %17 : vector<64x128xi1>, vector<64x128xf32>
    %c56_i32 = arith.constant 56 : i32
    %38 = vector.broadcast %c56_i32 : i32 to vector<64x128xi32>
    %39 = arith.cmpi slt, %11, %38 : vector<64x128xi32>
    %c56_i32_14 = arith.constant 56 : i32
    %40 = tpu.dynamic_rotate %21 by %c56_i32_14 dim 0 : vector<64x128xf32>, i32 -> vector<64x128xf32>
    %41 = arith.select %39, %40, %17 : vector<64x128xi1>, vector<64x128xf32>
    %c56_i32_15 = arith.constant 56 : i32
    %42 = vector.broadcast %c56_i32_15 : i32 to vector<64x128xi32>
    %43 = arith.cmpi slt, %11, %42 : vector<64x128xi32>
    %c56_i32_16 = arith.constant 56 : i32
    %44 = tpu.dynamic_rotate %10 by %c56_i32_16 dim 0 : vector<64x128xf32>, i32 -> vector<64x128xf32>
    %45 = arith.select %43, %44, %17 : vector<64x128xi1>, vector<64x128xf32>
    %c56_i32_17 = arith.constant 56 : i32
    %46 = vector.broadcast %c56_i32_17 : i32 to vector<64x128xi32>
    %47 = arith.cmpi slt, %11, %46 : vector<64x128xi32>
    %c56_i32_18 = arith.constant 56 : i32
    %48 = tpu.dynamic_rotate %25 by %c56_i32_18 dim 0 : vector<64x128xf32>, i32 -> vector<64x128xf32>
    %49 = arith.select %47, %48, %17 : vector<64x128xi1>, vector<64x128xf32>
    %50 = tpu.concatenate %29, %33, %37, %21, %10, %25, %41, %45, %49 in 1 : vector<64x128xf32>, vector<64x128xf32>, vector<64x128xf32>, vector<64x128xf32>, vector<64x128xf32>, vector<64x128xf32>, vector<64x128xf32>, vector<64x128xf32>, vector<64x128xf32> -> vector<64x1152xf32>
    %51 = arith.truncf %50 : vector<64x1152xf32> to vector<64x1152xbf16>
    %c0_19 = arith.constant 0 : index
    %c0_20 = arith.constant 0 : index
    %52 = vector.load %arg4[%c0_19, %c0_20] : memref<1152x128xbf16, #tpu.memory_space<vmem>>, vector<1152x128xbf16>
    %cst_21 = arith.constant dense<0.000000e+00> : vector<64x128xf32>
    %53 = tpu.matmul %51, %52, %cst_21 {dimension_numbers = #tpu.dot_dimension_numbers<[1], [0], [0], [1], [0, 0, 1, 1], [], []>} : vector<64x1152xbf16>, vector<1152x128xbf16>, vector<64x128xf32> -> vector<64x128xf32>
    %c0_22 = arith.constant 0 : index
    %c0_23 = arith.constant 0 : index
    %54 = vector.load %arg5[%c0_22, %c0_23] : memref<1x128xf32, #tpu.memory_space<vmem>>, vector<1x128xf32>
    %55 = vector.broadcast %54 : vector<1x128xf32> to vector<64x128xf32>
    %56 = arith.addf %53, %55 : vector<64x128xf32>
    %cst_24 = arith.constant 0.000000e+00 : f32
    %57 = vector.broadcast %cst_24 : f32 to vector<64x128xf32>
    %58 = arith.maximumf %56, %57 : vector<64x128xf32>
    %59 = arith.truncf %58 : vector<64x128xf32> to vector<64x128xbf16>
    %c0_25 = arith.constant 0 : index
    %c0_26 = arith.constant 0 : index
    %60 = vector.load %arg6[%c0_25, %c0_26] : memref<128x128xbf16, #tpu.memory_space<vmem>>, vector<128x128xbf16>
    %cst_27 = arith.constant dense<0.000000e+00> : vector<64x128xf32>
    %61 = tpu.matmul %59, %60, %cst_27 {dimension_numbers = #tpu.dot_dimension_numbers<[1], [0], [0], [1], [0, 0, 1, 1], [], []>} : vector<64x128xbf16>, vector<128x128xbf16>, vector<64x128xf32> -> vector<64x128xf32>
    %c0_28 = arith.constant 0 : index
    %c0_29 = arith.constant 0 : index
    %62 = vector.load %arg7[%c0_28, %c0_29] : memref<1x128xf32, #tpu.memory_space<vmem>>, vector<1x128xf32>
    %63 = vector.broadcast %62 : vector<1x128xf32> to vector<64x128xf32>
    %64 = arith.addf %61, %63 : vector<64x128xf32>
    %65 = vector.shape_cast %64 : vector<64x128xf32> to vector<8x8x128xf32>
    %c0_30 = arith.constant 0 : index
    %c0_31 = arith.constant 0 : index
    %c0_32 = arith.constant 0 : index
    %c0_33 = arith.constant 0 : index
    %66 = vector.load %arg1[%c0_30, %c0_31, %c0_32, %c0_33] : memref<1x8x8x128xf32, #tpu.memory_space<vmem>>, vector<1x8x8x128xf32>
    %67 = vector.shape_cast %66 : vector<1x8x8x128xf32> to vector<8x8x128xf32>
    %68 = arith.addf %65, %67 : vector<8x8x128xf32>
    %c0_34 = arith.constant 0 : index
    %c0_35 = arith.constant 0 : index
    %c0_36 = arith.constant 0 : index
    %c0_37 = arith.constant 0 : index
    %69 = vector.load %arg8[%c0_34, %c0_35, %c0_36, %c0_37] : memref<1x8x8x128xf32, #tpu.memory_space<vmem>>, vector<1x8x8x128xf32>
    %70 = vector.shape_cast %69 : vector<1x8x8x128xf32> to vector<8x8x128xf32>
    %71 = vector.shape_cast %68 : vector<8x8x128xf32> to vector<1x8x8x128xf32>
    tpu.vector_store %arg8[%c0_34, %c0_35, %c0_36, %c0_37], %71 {strides = array<i32>} : memref<1x8x8x128xf32, #tpu.memory_space<vmem>>, vector<1x8x8x128xf32>,
    return
  }
  func.func @transform_0(%arg0: i32) -> (i32, i32, i32, i32) {
    %c0_i32 = arith.constant 0 : i32
    %c0_i32_0 = arith.constant 0 : i32
    %c0_i32_1 = arith.constant 0 : i32
    %c0_i32_2 = arith.constant 0 : i32
    return %arg0, %c0_i32, %c0_i32_0, %c0_i32_1 : i32, i32, i32, i32
  }
  func.func @transform_1(%arg0: i32) -> (i32, i32) {
    %c0_i32 = arith.constant 0 : i32
    %c0_i32_0 = arith.constant 0 : i32
    %c0_i32_1 = arith.constant 0 : i32
    return %c0_i32, %c0_i32_0 : i32, i32
  }
  func.func @transform_2(%arg0: i32) -> (i32, i32) {
    %c0_i32 = arith.constant 0 : i32
    %c0_i32_0 = arith.constant 0 : i32
    %c0_i32_1 = arith.constant 0 : i32
    return %c0_i32, %c0_i32_0 : i32, i32
  }
  func.func @transform_3(%arg0: i32) -> (i32, i32) {
    %c0_i32 = arith.constant 0 : i32
    %c0_i32_0 = arith.constant 0 : i32
    %c0_i32_1 = arith.constant 0 : i32
    return %c0_i32, %c0_i32_0 : i32, i32
  }
  func.func @transform_4(%arg0: i32) -> (i32, i32) {
    %c0_i32 = arith.constant 0 : i32
    %c0_i32_0 = arith.constant 0 : i32
    %c0_i32_1 = arith.constant 0 : i32
    return %c0_i32, %c0_i32_0 : i32, i32
  }
  func.func @transform_5(%arg0: i32) -> (i32, i32) {
    %c0_i32 = arith.constant 0 : i32
    %c0_i32_0 = arith.constant 0 : i32
    %c0_i32_1 = arith.constant 0 : i32
    return %c0_i32, %c0_i32_0 : i32, i32
  }
  func.func @transform_6(%arg0: i32) -> (i32, i32) {
    %c0_i32 = arith.constant 0 : i32
    %c0_i32_0 = arith.constant 0 : i32
    %c0_i32_1 = arith.constant 0 : i32
    return %c0_i32, %c0_i32_0 : i32, i32
  }
  func.func @transform_7(%arg0: i32) -> (i32, i32, i32, i32) {
    %c0_i32 = arith.constant 0 : i32
    %c0_i32_0 = arith.constant 0 : i32
    %c0_i32_1 = arith.constant 0 : i32
    %c0_i32_2 = arith.constant 0 : i32
    return %arg0, %c0_i32, %c0_i32_0, %c0_i32_1 : i32, i32, i32, i32
  }
}

</mosaic_0001>

<llo_original>
// kernel: tpu_custom_call.1
$region0: #{tpu_custom_call.1}
  #allocation0 [shape = 'u32[]', space=smem, size = 0x4, offset = 0x4, fixed_abs, tag = 'smem constant byte address 0x4 - core index']
  #allocation1 [shape = 'u32[144,128]{1,0:T(1,128)}', space=vmem, size = 0x12000, scoped, tag = 'internal scratch']
  %s0 = inlined_call_operand.hbm [shape: f32[2,8,8,128], index: 0, kind: input, shape index: {}]
  %s1 = inlined_call_operand.hbm [shape: bf16[128,128], index: 1, kind: input, shape index: {}]
  %s2 = inlined_call_operand.vmem [shape: f32[1,128], index: 2, kind: input, shape index: {}]
  %s3 = inlined_call_operand.hbm [shape: bf16[1152,128], index: 3, kind: input, shape index: {}]
  %s4 = inlined_call_operand.vmem [shape: f32[1,128], index: 4, kind: input, shape index: {}]
  %s5 = inlined_call_operand.hbm [shape: bf16[128,128], index: 5, kind: input, shape index: {}]
  %s6 = inlined_call_operand.vmem [shape: f32[1,128], index: 6, kind: input, shape index: {}]
  %s7 = inlined_call_operand.hbm [shape: f32[2,8,8,128], index: 7, kind: output, shape index: {}]
  %s8 = sld [smem:[#allocation0]]
  $region77: #{tpu_custom_call.1} parent=0
    _
  %s10 = ssub.s32 1, %s8
  %s11 = scalar_select 0, %s10, %s8
  $region1: #{tpu_custom_call.1} parent=0
    #allocation2 [shape = 'u8[65536]{0}', space=vmem, size = 0x10000, scoped, tag = 'input window, operand 0']
    #allocation3 [shape = 's32[2]{0}', space=sflag, size = 0x8, scoped, tag = 'scoped memory for tpu_custom_call.1']
    #allocation4 [shape = 's32[2]{0}', space=sflag, size = 0x8, scoped, tag = 'scoped memory for tpu_custom_call.1']
    #allocation5 [shape = 'u8[32768]{0}', space=vmem, size = 0x8000, scoped, tag = 'input window, operand 1, single buffered']
    #allocation6 [shape = 's32[1]{0}', space=sflag, size = 0x4, scoped, tag = 'scoped memory for tpu_custom_call.1']
    #allocation7 [shape = 'u8[294912]{0}', space=vmem, size = 0x48000, scoped, tag = 'input window, operand 3, single buffered']
    #allocation8 [shape = 'u8[32768]{0}', space=vmem, size = 0x8000, scoped, tag = 'input window, operand 5, single buffered']
    #allocation9 [shape = 's32[1]{0}', space=sflag, size = 0x4, scoped, tag = 'scoped memory for tpu_custom_call.1']
    #allocation10 [shape = 'u8[65536]{0}', space=vmem, size = 0x10000, scoped, tag = 'output window, operand 0']
    %12 = vsyncpa [#allocation3], 0
    %s13 = scalar_lea.sflag [#allocation3], 1
    %14 = vsyncpa %s13, 0
    %15 = vsyncpa [#allocation6], 0
    %16 = vsyncpa [#allocation9], 0
    %17 = vsyncpa [#allocation4], 0
    %s18 = scalar_lea.sflag [#allocation4], 1
    %19 = vsyncpa %s18, 0
    loop: start=0, step=1, limit=4
    $region2: #{tpu_custom_call.1} parent=1 // loop_pre_header
      _
    $region3: #{tpu_custom_call.1} parent=1 // loop_header
      %s21 = sphi 0, %s25
      %p22 = scmp.ge.s32.totalorder %s21, 4
      %s31 = sphi 0, %s33
      %s34 = sphi 0, %s31
      %s35 = sphi 0, %s34
      %s51 = sphi 0, %s35
      %s55 = sphi 0, %s55
      %s57 = sphi 0, %s55
      %s58 = sphi 0, %s57
      %s72 = sphi 0, %s58
      %s76 = sphi 0, %s76
      %s78 = sphi 0, %s76
      %s79 = sphi 0, %s78
      %s93 = sphi 0, %s79
      %s97 = sphi 0, %s97
      %s99 = sphi 0, %s97
      %s100 = sphi 0, %s99
      %s114 = sphi 0, %s100
      %s118 = sphi 0, %s118
      %s120 = sphi 0, %s118
      %s121 = sphi 0, %s120
      %s135 = sphi 0, %s121
      %s139 = sphi 0, %s139
      %s141 = sphi 0, %s139
      %s142 = sphi 0, %s141
      %s156 = sphi 0, %s142
      %s160 = sphi 0, %s160
      %s162 = sphi 0, %s160
      %s163 = sphi 0, %s162
      %s177 = sphi 0, %s163
      %s183 = sphi 0, %s185
      %s186 = sphi 0, %s183
      %s187 = sphi 0, %s186
      %s203 = sphi 0, %s187
    $region4: #{tpu_custom_call.1} parent=1 // loop_header_branch
      %24 = sbr.rel (%p22) target = $region8
    $region5: #{tpu_custom_call.1} parent=1 // loop_body
      %s26 = ssub.s32 %s21, 1
      %s27 = ssub.s32 %s21, 2
      %s28 = sadd.s32 %s21, 1
      %s29 = ssub.s32 %s21, %s28
      %p30 = scmp.eq.s32.totalorder %s29, 0
      %s32 = sadd.s32 %s31, 1
      %s33 = scalar_select %p30, %s31, %s32
      %p36 = pneg %p30
      %p37 = scmp.eq.s32.totalorder %s21, 1
      %p38 = por %p36, %p37
      %p39 = scmp.ne.s32.totalorder %s31, %s34
      %p40 = scmp.eq.s32.totalorder %s21, 0
      %p41 = por %p39, %p40
      %p42 = scmp.ne.s32.totalorder %s31, %s34
      %p43 = scmp.eq.s32.totalorder %s26, 1
      %p44 = por %p42, %p43
      %p45 = scmp.ne.s32.totalorder %s34, %s35
      %p46 = scmp.eq.s32.totalorder %s26, 0
      %p47 = por %p45, %p46
      %p48 = scmp.ne.s32.totalorder %s34, %s35
      %p49 = scmp.eq.s32.totalorder %s27, 1
      %p50 = por %p48, %p49
      %p52 = scmp.ne.s32.totalorder %s35, %s51
      %p53 = scmp.eq.s32.totalorder %s27, 0
      %p54 = por %p52, %p53
      %s56 = sadd.s32 %s55, 1
      %p59 = scmp.eq.s32.totalorder %s21, 1
      %p60 = scmp.ne.s32.totalorder %s55, %s57
      %p61 = scmp.eq.s32.totalorder %s21, 0
      %p62 = por %p60, %p61
      %p63 = scmp.ne.s32.totalorder %s55, %s57
      %p64 = scmp.eq.s32.totalorder %s26, 1
      %p65 = por %p63, %p64
      %p66 = scmp.ne.s32.totalorder %s57, %s58
      %p67 = scmp.eq.s32.totalorder %s26, 0
      %p68 = por %p66, %p67
      %p69 = scmp.ne.s32.totalorder %s57, %s58
      %p70 = scmp.eq.s32.totalorder %s27, 1
      %p71 = por %p69, %p70
      %p73 = scmp.ne.s32.totalorder %s58, %s72
      %p74 = scmp.eq.s32.totalorder %s27, 0
      %p75 = por %p73, %p74
      %s77 = sadd.s32 %s76, 1
      %p80 = scmp.eq.s32.totalorder %s21, 1
      %p81 = scmp.ne.s32.totalorder %s76, %s78
      %p82 = scmp.eq.s32.totalorder %s21, 0
      %p83 = por %p81, %p82
      %p84 = scmp.ne.s32.totalorder %s76, %s78
      %p85 = scmp.eq.s32.totalorder %s26, 1
      %p86 = por %p84, %p85
      %p87 = scmp.ne.s32.totalorder %s78, %s79
      %p88 = scmp.eq.s32.totalorder %s26, 0
      %p89 = por %p87, %p88
      %p90 = scmp.ne.s32.totalorder %s78, %s79
      %p91 = scmp.eq.s32.totalorder %s27, 1
      %p92 = por %p90, %p91
      %p94 = scmp.ne.s32.totalorder %s79, %s93
      %p95 = scmp.eq.s32.totalorder %s27, 0
      %p96 = por %p94, %p95
      %s98 = sadd.s32 %s97, 1
      %p101 = scmp.eq.s32.totalorder %s21, 1
      %p102 = scmp.ne.s32.totalorder %s97, %s99
      %p103 = scmp.eq.s32.totalorder %s21, 0
      %p104 = por %p102, %p103
      %p105 = scmp.ne.s32.totalorder %s97, %s99
      %p106 = scmp.eq.s32.totalorder %s26, 1
      %p107 = por %p105, %p106
      %p108 = scmp.ne.s32.totalorder %s99, %s100
      %p109 = scmp.eq.s32.totalorder %s26, 0
      %p110 = por %p108, %p109
      %p111 = scmp.ne.s32.totalorder %s99, %s100
      %p112 = scmp.eq.s32.totalorder %s27, 1
      %p113 = por %p111, %p112
      %p115 = scmp.ne.s32.totalorder %s100, %s114
      %p116 = scmp.eq.s32.totalorder %s27, 0
      %p117 = por %p115, %p116
      %s119 = sadd.s32 %s118, 1
      %p122 = scmp.eq.s32.totalorder %s21, 1
      %p123 = scmp.ne.s32.totalorder %s118, %s120
      %p124 = scmp.eq.s32.totalorder %s21, 0
      %p125 = por %p123, %p124
      %p126 = scmp.ne.s32.totalorder %s118, %s120
      %p127 = scmp.eq.s32.totalorder %s26, 1
      %p128 = por %p126, %p127
      %p129 = scmp.ne.s32.totalorder %s120, %s121
      %p130 = scmp.eq.s32.totalorder %s26, 0
      %p131 = por %p129, %p130
      %p132 = scmp.ne.s32.totalorder %s120, %s121
      %p133 = scmp.eq.s32.totalorder %s27, 1
      %p134 = por %p132, %p133
      %p136 = scmp.ne.s32.totalorder %s121, %s135
      %p137 = scmp.eq.s32.totalorder %s27, 0
      %p138 = por %p136, %p137
      %s140 = sadd.s32 %s139, 1
      %p143 = scmp.eq.s32.totalorder %s21, 1
      %p144 = scmp.ne.s32.totalorder %s139, %s141
      %p145 = scmp.eq.s32.totalorder %s21, 0
      %p146 = por %p144, %p145
      %p147 = scmp.ne.s32.totalorder %s139, %s141
      %p148 = scmp.eq.s32.totalorder %s26, 1
      %p149 = por %p147, %p148
      %p150 = scmp.ne.s32.totalorder %s141, %s142
      %p151 = scmp.eq.s32.totalorder %s26, 0
      %p152 = por %p150, %p151
      %p153 = scmp.ne.s32.totalorder %s141, %s142
      %p154 = scmp.eq.s32.totalorder %s27, 1
      %p155 = por %p153, %p154
      %p157 = scmp.ne.s32.totalorder %s142, %s156
      %p158 = scmp.eq.s32.totalorder %s27, 0
      %p159 = por %p157, %p158
      %s161 = sadd.s32 %s160, 1
      %p164 = scmp.eq.s32.totalorder %s21, 1
      %p165 = scmp.ne.s32.totalorder %s160, %s162
      %p166 = scmp.eq.s32.totalorder %s21, 0
      %p167 = por %p165, %p166
      %p168 = scmp.ne.s32.totalorder %s160, %s162
      %p169 = scmp.eq.s32.totalorder %s26, 1
      %p170 = por %p168, %p169
      %p171 = scmp.ne.s32.totalorder %s162, %s163
      %p172 = scmp.eq.s32.totalorder %s26, 0
      %p173 = por %p171, %p172
      %p174 = scmp.ne.s32.totalorder %s162, %s163
      %p175 = scmp.eq.s32.totalorder %s27, 1
      %p176 = por %p174, %p175
      %p178 = scmp.ne.s32.totalorder %s163, %s177
      %p179 = scmp.eq.s32.totalorder %s27, 0
      %p180 = por %p178, %p179
      %s181 = ssub.s32 %s21, %s28
      %p182 = scmp.eq.s32.totalorder %s181, 0
      %s184 = sadd.s32 %s183, 1
      %s185 = scalar_select %p182, %s183, %s184
      %p188 = pneg %p182
      %p189 = scmp.eq.s32.totalorder %s21, 1
      %p190 = por %p188, %p189
      %p191 = scmp.ne.s32.totalorder %s183, %s186
      %p192 = scmp.eq.s32.totalorder %s21, 0
      %p193 = por %p191, %p192
      %p194 = scmp.ne.s32.totalorder %s183, %s186
      %p195 = scmp.eq.s32.totalorder %s26, 1
      %p196 = por %p194, %p195
      %p197 = scmp.ne.s32.totalorder %s186, %s187
      %p198 = scmp.eq.s32.totalorder %s26, 0
      %p199 = por %p197, %p198
      %p200 = scmp.ne.s32.totalorder %s186, %s187
      %p201 = scmp.eq.s32.totalorder %s27, 1
      %p202 = por %p200, %p201
      %p204 = scmp.ne.s32.totalorder %s187, %s203
      %p205 = scmp.eq.s32.totalorder %s27, 0
      %p206 = por %p204, %p205
      %p207 = scmp.le.s32.totalorder 1, %s21
      %p208 = scmp.lt.s32.totalorder %s21, 3
      %p209 = pnand %p207, %p208
      %p210 = pneg %p209
      // Predicated region
      $region9: #{tpu_custom_call.1} parent=5 // pred_check
        _
      $region10: #{tpu_custom_call.1} parent=5 // pred_check_branch
        %212 = sbr.rel (%p209) target = $region12
      $region11: #{tpu_custom_call.1} parent=5 // pred_region
        %s213 = ssub.s32 %s21, 1
        // Predicated region
        $region13: #{tpu_custom_call.1} parent=11 // pred_check
          %p214 = pneg %p68
        $region14: #{tpu_custom_call.1} parent=11 // pred_check_branch
          %216 = sbr.rel (%p214) target = $region16
        $region15: #{tpu_custom_call.1} parent=11 // pred_region
          %s218 = ssub.s32 1024, 1024
          %219 = vsyncadd [#allocation6], %s218
          %s220 = sshll.u32 [#allocation5], 4
          %s221 = int_to_ptr.vmem [resolvable:$true] %s220
          %226 = dma.hbm_to_vmem [thread:$0]  %s1, 1024, %s221, [#allocation6], 64, 64, 4
        $region16: #{tpu_custom_call.1} parent=11 // pred_fallthru
          _
        // Predicated region
        $region17: #{tpu_custom_call.1} parent=11 // pred_check
          %p227 = pneg %p89
        $region18: #{tpu_custom_call.1} parent=11 // pred_check_branch
          %229 = sbr.rel (%p227) target = $region20
        $region19: #{tpu_custom_call.1} parent=11 // pred_region
          _
        $region20: #{tpu_custom_call.1} parent=11 // pred_fallthru
          _
        // Predicated region
        $region21: #{tpu_custom_call.1} parent=11 // pred_check
          %p230 = pneg %p110
        $region22: #{tpu_custom_call.1} parent=11 // pred_check_branch
          %232 = sbr.rel (%p230) target = $region24
        $region23: #{tpu_custom_call.1} parent=11 // pred_region
          %s234 = ssub.s32 9216, 9216
          %235 = vsyncadd [#allocation6], %s234
          %s236 = sshll.u32 [#allocation7], 4
          %s237 = int_to_ptr.vmem [resolvable:$true] %s236
          %242 = dma.hbm_to_vmem [thread:$0]  %s3, 9216, %s237, [#allocation6], 64, 64, 4
        $region24: #{tpu_custom_call.1} parent=11 // pred_fallthru
          _
        // Predicated region
        $region25: #{tpu_custom_call.1} parent=11 // pred_check
          %p243 = pneg %p131
        $region26: #{tpu_custom_call.1} parent=11 // pred_check_branch
          %245 = sbr.rel (%p243) target = $region28
        $region27: #{tpu_custom_call.1} parent=11 // pred_region
          _
        $region28: #{tpu_custom_call.1} parent=11 // pred_fallthru
          _
        // Predicated region
        $region29: #{tpu_custom_call.1} parent=11 // pred_check
          %p246 = pneg %p152
        $region30: #{tpu_custom_call.1} parent=11 // pred_check_branch
          %248 = sbr.rel (%p246) target = $region32
        $region31: #{tpu_custom_call.1} parent=11 // pred_region
          %s250 = ssub.s32 1024, 1024
          %251 = vsyncadd [#allocation9], %s250
          %s252 = sshll.u32 [#allocation8], 4
          %s253 = int_to_ptr.vmem [resolvable:$true] %s252
          %258 = dma.hbm_to_vmem [thread:$0]  %s5, 1024, %s253, [#allocation9], 64, 64, 4
        $region32: #{tpu_custom_call.1} parent=11 // pred_fallthru
          _
        // Predicated region
        $region33: #{tpu_custom_call.1} parent=11 // pred_check
          %p259 = pneg %p173
        $region34: #{tpu_custom_call.1} parent=11 // pred_check_branch
          %261 = sbr.rel (%p259) target = $region36
        $region35: #{tpu_custom_call.1} parent=11 // pred_region
          _
        $region36: #{tpu_custom_call.1} parent=11 // pred_fallthru
          _
      $region12: #{tpu_custom_call.1} parent=5 // pred_fallthru
        _
      %p262 = scmp.lt.s32.totalorder %s21, 2
      // Predicated region
      $region37: #{tpu_custom_call.1} parent=5 // pred_check
        %p263 = pneg %p262
      $region38: #{tpu_custom_call.1} parent=5 // pred_check_branch
        %265 = sbr.rel (%p263) target = $region40
      $region39: #{tpu_custom_call.1} parent=5 // pred_region
        // Predicated region
        $region41: #{tpu_custom_call.1} parent=39 // pred_check
          %p266 = pneg %p41
        $region42: #{tpu_custom_call.1} parent=39 // pred_check_branch
          %268 = sbr.rel (%p266) target = $region44
        $region43: #{tpu_custom_call.1} parent=39 // pred_region
          %s269 = sand.u32 %s31, 1
          %s270 = scalar_lea.sflag [#allocation3], %s269
          %s271 = sand.u32 %s31, 1
          %s272 = smul.addr %s271, 64
          %s273 = scalar_lea.vmem [#allocation2], %s272
          %s275 = ssub.s32 1024, 1024
          %276 = vsyncadd %s270, %s275
          %s277 = smul.addr %s21, 8
          %s278 = smul.addr %s277, 128
          %s279 = scalar_lea.hbm %s0, %s278
          %s280 = sshll.u32 %s273, 4
          %s281 = int_to_ptr.vmem [resolvable:$true] %s280
          %286 = dma.hbm_to_vmem [thread:$0]  %s279, 1024, %s281, %s270, 128, 128, 8
        $region44: #{tpu_custom_call.1} parent=39 // pred_fallthru
          _
      $region40: #{tpu_custom_call.1} parent=5 // pred_fallthru
        _
      %p287 = scmp.le.s32.totalorder 1, %s21
      %p288 = scmp.lt.s32.totalorder %s21, 3
      %p289 = pnand %p287, %p288
      %p290 = pneg %p289
      // Predicated region
      $region45: #{tpu_custom_call.1} parent=5 // pred_check
        _
      $region46: #{tpu_custom_call.1} parent=5 // pred_check_branch
        %292 = sbr.rel (%p289) target = $region48
      $region47: #{tpu_custom_call.1} parent=5 // pred_region
        %s293 = ssub.s32 %s21, 1
        %s294 = sand.u32 %s34, 1
        %s295 = scalar_lea.sflag [#allocation3], %s294
        %s296 = sand.u32 %s34, 1
        %s297 = smul.addr %s296, 64
        %s298 = scalar_lea.vmem [#allocation2], %s297
        // Predicated region
        $region49: #{tpu_custom_call.1} parent=47 // pred_check
          %p299 = pneg %p47
        $region50: #{tpu_custom_call.1} parent=47 // pred_check_branch
          %301 = sbr.rel (%p299) target = $region52
        $region51: #{tpu_custom_call.1} parent=47 // pred_region
          %302 = dma.done %s295, 1024
        $region52: #{tpu_custom_call.1} parent=47 // pred_fallthru
          _
        // Predicated region
        $region53: #{tpu_custom_call.1} parent=47 // pred_check
          %p303 = pneg %p68
        $region54: #{tpu_custom_call.1} parent=47 // pred_check_branch
          %305 = sbr.rel (%p303) target = $region56
        $region55: #{tpu_custom_call.1} parent=47 // pred_region
          %306 = dma.done [#allocation6], 1024
        $region56: #{tpu_custom_call.1} parent=47 // pred_fallthru
          _
        // Predicated region
        $region57: #{tpu_custom_call.1} parent=47 // pred_check
          %p307 = pneg %p110
        $region58: #{tpu_custom_call.1} parent=47 // pred_check_branch
          %309 = sbr.rel (%p307) target = $region60
        $region59: #{tpu_custom_call.1} parent=47 // pred_region
          %310 = dma.done [#allocation6], 9216
        $region60: #{tpu_custom_call.1} parent=47 // pred_fallthru
          _
        // Predicated region
        $region61: #{tpu_custom_call.1} parent=47 // pred_check
          %p311 = pneg %p152
        $region62: #{tpu_custom_call.1} parent=47 // pred_check_branch
          %313 = sbr.rel (%p311) target = $region64
        $region63: #{tpu_custom_call.1} parent=47 // pred_region
          %314 = dma.done [#allocation9], 1024
        $region64: #{tpu_custom_call.1} parent=47 // pred_fallthru
          _
        %s315 = sand.u32 %s34, 1
        %s316 = scalar_lea.sflag [#allocation3], %s315
        %s317 = sand.u32 %s34, 1
        %s318 = smul.addr %s317, 64
        %s319 = scalar_lea.vmem [#allocation2], %s318
        %p320 = pneg %p47
        %p321 = pneg %p44
        %p322 = pneg %p68
        %p323 = pneg %p65
        %p324 = pneg %p89
        %p325 = pneg %p86
        %p326 = pneg %p110
        %p327 = pneg %p107
        %p328 = pneg %p131
        %p329 = pneg %p128
        %p330 = pneg %p152
        %p331 = pneg %p149
        %p332 = pneg %p173
        %p333 = pneg %p170
        %p334 = pneg %p199
        %p335 = pneg %p196
        %s336 = sand.u32 %s186, 1
        %s337 = scalar_lea.sflag [#allocation4], %s336
        %s338 = sand.u32 %s186, 1
        %s339 = smul.addr %s338, 64
        %s340 = scalar_lea.vmem [#allocation10], %s339
        %v342 = vld [vmem:[%s298] sm:$0xff]
        %v343 = vld [vmem:[%s298 + $0x8] sm:$0xff]
        %v344 = vld [vmem:[%s298 + $0x10] sm:$0xff]
        %v345 = vld [vmem:[%s298 + $0x18] sm:$0xff]
        %v346 = vld [vmem:[%s298 + $0x20] sm:$0xff]
        %v347 = vld [vmem:[%s298 + $0x28] sm:$0xff]
        %v348 = vld [vmem:[%s298 + $0x30] sm:$0xff]
        %v349 = vld [vmem:[%s298 + $0x38] sm:$0xff]
        %v350 = vpack.c.bf16 %v343, %v342
        %v351 = vpack.c.bf16 %v345, %v344
        %v352 = vpack.c.bf16 %v347, %v346
        %v353 = vpack.c.bf16 %v349, %v348
        %v354 = vld [vmem:[#allocation5] sm:$0xf]
        %v355 = vld [vmem:[#allocation5 + $0x4] sm:$0xf]
        %v356 = vld [vmem:[#allocation5 + $0x8] sm:$0xf]
        %v357 = vld [vmem:[#allocation5 + $0xc] sm:$0xf]
        %v358 = vld [vmem:[#allocation5 + $0x10] sm:$0xf]
        %v359 = vld [vmem:[#allocation5 + $0x14] sm:$0xf]
        %v360 = vld [vmem:[#allocation5 + $0x18] sm:$0xf]
        %v361 = vld [vmem:[#allocation5 + $0x1c] sm:$0xf]
        %v362 = vld [vmem:[#allocation5 + $0x20] sm:$0xf]
        %v363 = vld [vmem:[#allocation5 + $0x24] sm:$0xf]
        %v364 = vld [vmem:[#allocation5 + $0x28] sm:$0xf]
        %v365 = vld [vmem:[#allocation5 + $0x2c] sm:$0xf]
        %v366 = vld [vmem:[#allocation5 + $0x30] sm:$0xf]
        %v367 = vld [vmem:[#allocation5 + $0x34] sm:$0xf]
        %v368 = vld [vmem:[#allocation5 + $0x38] sm:$0xf]
        %v369 = vld [vmem:[#allocation5 + $0x3c] sm:$0xf]
        %v370 = vld [vmem:[%s2] sm:$0x1]
        %v372 = vlaneseq
        %v373 = vshrl.u32 %v372, 7
        %v374 = vsub.s32 0, %v373
        %v375 = vrot.slane %v370, %v374
        %v393 = vunpack.c.l.b16 %v354
        %v394 = vunpack.c.l.b16 %v355
        %v395 = vunpack.c.l.b16 %v356
        %v396 = vunpack.c.l.b16 %v357
        %v397 = vunpack.c.l.b16 %v358
        %v398 = vunpack.c.l.b16 %v359
        %v399 = vunpack.c.l.b16 %v360
        %v400 = vunpack.c.l.b16 %v361
        %v401 = vunpack.c.l.b16 %v362
        %v402 = vunpack.c.l.b16 %v363
        %v403 = vunpack.c.l.b16 %v364
        %v404 = vunpack.c.l.b16 %v365
        %v405 = vunpack.c.l.b16 %v366
        %v406 = vunpack.c.l.b16 %v367
        %v407 = vunpack.c.l.b16 %v368
        %v408 = vunpack.c.l.b16 %v369
        %v409 = vpack.c.b16 %v394, %v393
        %v410 = vpack.c.b16 %v396, %v395
        %v411 = vpack.c.b16 %v398, %v397
        %v412 = vpack.c.b16 %v400, %v399
        %v413 = vpack.c.b16 %v402, %v401
        %v414 = vpack.c.b16 %v404, %v403
        %v415 = vpack.c.b16 %v406, %v405
        %v416 = vpack.c.b16 %v408, %v407
        %425 = vmatprep.subr.bf16.mxu0 0
        %426 = vmatpush1.bf16.msra.mxu0 %v409
        %427 = vmatprep.subr.bf16.mxu0 0
        %428 = vmatpush1.bf16.msra.mxu0 %v410
        %429 = vmatprep.subr.bf16.mxu0 0
        %430 = vmatpush1.bf16.msra.mxu0 %v411
        %431 = vmatprep.subr.bf16.mxu0 0
        %432 = vmatpush1.bf16.msra.mxu0 %v412
        %433 = vmatprep.subr.bf16.mxu0 0
        %434 = vmatpush1.bf16.msra.mxu0 %v413
        %435 = vmatprep.subr.bf16.mxu0 0
        %436 = vmatpush1.bf16.msra.mxu0 %v414
        %437 = vmatprep.subr.bf16.mxu0 0
        %438 = vmatpush1.bf16.msra.mxu0 %v415
        %439 = vmatprep.subr.bf16.mxu0 0
        %440 = vmatpush1.bf16.msra.mxu0 %v416
        %441 = vmatprep.subr.bf16.mxu0 0
        %442 = vmatpush1.bf16.msra.mxu0 0
        %443 = vmatprep.subr.bf16.mxu0 0
        %444 = vmatpush1.bf16.msra.mxu0 0
        %445 = vmatprep.subr.bf16.mxu0 0
        %446 = vmatpush1.bf16.msra.mxu0 0
        %447 = vmatprep.subr.bf16.mxu0 0
        %448 = vmatpush1.bf16.msra.mxu0 0
        %449 = vmatprep.subr.bf16.mxu0 0
        %450 = vmatpush1.bf16.msra.mxu0 0
        %451 = vmatprep.subr.bf16.mxu0 0
        %452 = vmatpush1.bf16.msra.mxu0 0
        %453 = vmatprep.subr.bf16.mxu0 0
        %454 = vmatpush1.bf16.msra.mxu0 0
        %455 = vmatprep.subr.bf16.mxu0 0
        %456 = vmatpush1.bf16.msra.mxu0 0
        %457 = vmatprep.mubr.bf16.mxu0 0
        %458 = vmatmul.mubr.bf16.gmra.mrb[0].mxu0 %v350
        %v459 = vpop.f32.mrb[0].mxu0
        %v460 = vadd.f32 %v375, %v459
        %v461 = vpop.f32.mrb[0].mxu0
        %v462 = vpop.f32.mrb[0].mxu0
        %v463 = vadd.f32 %v375, %v462
        %v464 = vpop.f32.mrb[0].mxu0
        %465 = vmatprep.mubr.bf16.mxu0 0
        %466 = vmatmul.mubr.bf16.gmra.mrb[0].mxu0 %v351
        %v467 = vpop.f32.mrb[0].mxu0
        %v468 = vadd.f32 %v375, %v467
        %v469 = vpop.f32.mrb[0].mxu0
        %v470 = vpop.f32.mrb[0].mxu0
        %v471 = vadd.f32 %v375, %v470
        %v472 = vpop.f32.mrb[0].mxu0
        %473 = vmatprep.mubr.bf16.mxu0 0
        %474 = vmatmul.mubr.bf16.gmra.mrb[0].mxu0 %v352
        %v475 = vpop.f32.mrb[0].mxu0
        %v476 = vadd.f32 %v375, %v475
        %v477 = vpop.f32.mrb[0].mxu0
        %v478 = vpop.f32.mrb[0].mxu0
        %v479 = vadd.f32 %v375, %v478
        %v480 = vpop.f32.mrb[0].mxu0
        %481 = vmatprep.mubr.bf16.mxu0 0
        %482 = vmatmul.mubr.bf16.gmra.mrb[0].mxu0 %v353
        %v483 = vpop.f32.mrb[0].mxu0
        %v484 = vadd.f32 %v375, %v483
        %v485 = vpop.f32.mrb[0].mxu0
        %v486 = vpop.f32.mrb[0].mxu0
        %v487 = vadd.f32 %v375, %v486
        %v488 = vpop.f32.mrb[0].mxu0
        %489 = vdwg.mxu0
        %v490 = vmax.f32 %v460, 0.0
        %v491 = vmax.f32 %v463, 0.0
        %v492 = vmax.f32 %v468, 0.0
        %v493 = vmax.f32 %v471, 0.0
        %v494 = vmax.f32 %v476, 0.0
        %v495 = vmax.f32 %v479, 0.0
        %v496 = vmax.f32 %v484, 0.0
        %v497 = vmax.f32 %v487, 0.0
        %v498 = vlaneseq
        %v499 = vshrl.u32 %v498, 7
        %v500 = vadd.s32 %v499, 8
        %v501 = vadd.s32 %v499, 16
        %v502 = vadd.s32 %v499, 24
        %v503 = vadd.s32 %v499, 32
        %v504 = vadd.s32 %v499, 40
        %v505 = vadd.s32 %v499, 48
        %v506 = vadd.s32 %v499, 56
        %vm507 = vcmp.ne.s32.totalorder %v499, 0
        %v508 = vrot.slane %v490, 7
        %v509 = vrot.slane %v491, 7
        %v510 = vrot.slane %v492, 7
        %v511 = vrot.slane %v493, 7
        %v512 = vrot.slane %v494, 7
        %v513 = vrot.slane %v495, 7
        %v514 = vrot.slane %v496, 7
        %v515 = vrot.slane %v497, 7
        %vm516 = vcmp.lt.s32.totalorder %v499, 1
        %v517 = vsel %vm516, %v514, %v515
        %v518 = vsel %vm516, %v513, %v514
        %v519 = vsel %vm516, %v512, %v513
        %v520 = vsel %vm516, %v511, %v512
        %v521 = vsel %vm516, %v510, %v511
        %v522 = vsel %vm516, %v509, %v510
        %v523 = vsel %vm516, %v508, %v509
        %v524 = vsel %vm516, %v515, %v508
        %v525 = vsel %vm507, %v524, 0.0
        %v526 = vsel %vm507, %v523, 0.0
        %v527 = vsel %vm507, %v522, 0.0
        %v528 = vsel %vm507, %v521, 0.0
        %v529 = vsel %vm507, %v520, 0.0
        %v530 = vsel %vm507, %v519, 0.0
        %v531 = vsel %vm507, %v518, 0.0
        %v532 = vsel %vm507, %v517, 0.0
        %vm533 = vcmp.ne.s32.totalorder %v499, 7
        %v534 = vrot.slane %v490, 1
        %v535 = vrot.slane %v491, 1
        %v536 = vrot.slane %v492, 1
        %v537 = vrot.slane %v493, 1
        %v538 = vrot.slane %v494, 1
        %v539 = vrot.slane %v495, 1
        %v540 = vrot.slane %v496, 1
        %v541 = vrot.slane %v497, 1
        %vm542 = vcmp.lt.s32.totalorder %v499, 7
        %v543 = vsel %vm542, %v540, %v541
        %v544 = vsel %vm542, %v539, %v540
        %v545 = vsel %vm542, %v538, %v539
        %v546 = vsel %vm542, %v537, %v538
        %v547 = vsel %vm542, %v536, %v537
        %v548 = vsel %vm542, %v535, %v536
        %v549 = vsel %vm542, %v534, %v535
        %v550 = vsel %vm542, %v541, %v534
        %v551 = vsel %vm533, %v549, 0.0
        %v552 = vsel %vm533, %v548, 0.0
        %v553 = vsel %vm533, %v547, 0.0
        %v554 = vsel %vm533, %v546, 0.0
        %v555 = vsel %vm533, %v545, 0.0
        %v556 = vsel %vm533, %v544, 0.0
        %v557 = vsel %vm533, %v543, 0.0
        %v558 = vsel %vm533, %v550, 0.0
        %vm559 = vcmp.ge.s32.totalorder %v499, 8
        %vm560 = vcmp.ge.s32.totalorder %v500, 8
        %vm561 = vcmp.ge.s32.totalorder %v501, 8
        %vm562 = vcmp.ge.s32.totalorder %v502, 8
        %vm563 = vcmp.ge.s32.totalorder %v503, 8
        %vm564 = vcmp.ge.s32.totalorder %v504, 8
        %vm565 = vcmp.ge.s32.totalorder %v505, 8
        %vm566 = vcmp.ge.s32.totalorder %v506, 8
        %v567 = vsel %vm559, %v532, 0.0
        %v568 = vsel %vm560, %v525, 0.0
        %v569 = vsel %vm561, %v526, 0.0
        %v570 = vsel %vm562, %v527, 0.0
        %v571 = vsel %vm563, %v528, 0.0
        %v572 = vsel %vm564, %v529, 0.0
        %v573 = vsel %vm565, %v530, 0.0
        %v574 = vsel %vm566, %v531, 0.0
        %v575 = vsel %vm559, %v497, 0.0
        %v576 = vsel %vm560, %v490, 0.0
        %v577 = vsel %vm561, %v491, 0.0
        %v578 = vsel %vm562, %v492, 0.0
        %v579 = vsel %vm563, %v493, 0.0
        %v580 = vsel %vm564, %v494, 0.0
        %v581 = vsel %vm565, %v495, 0.0
        %v582 = vsel %vm566, %v496, 0.0
        %v583 = vsel %vm559, %v558, 0.0
        %v584 = vsel %vm560, %v551, 0.0
        %v585 = vsel %vm561, %v552, 0.0
        %v586 = vsel %vm562, %v553, 0.0
        %v587 = vsel %vm563, %v554, 0.0
        %v588 = vsel %vm564, %v555, 0.0
        %v589 = vsel %vm565, %v556, 0.0
        %v590 = vsel %vm566, %v557, 0.0
        %vm591 = vcmp.lt.s32.totalorder %v499, 56
        %vm592 = vcmp.lt.s32.totalorder %v500, 56
        %vm593 = vcmp.lt.s32.totalorder %v501, 56
        %vm594 = vcmp.lt.s32.totalorder %v502, 56
        %vm595 = vcmp.lt.s32.totalorder %v503, 56
        %vm596 = vcmp.lt.s32.totalorder %v504, 56
        %vm597 = vcmp.lt.s32.totalorder %v505, 56
        %vm598 = vcmp.lt.s32.totalorder %v506, 56
        %v599 = vsel %vm591, %v526, 0.0
        %v600 = vsel %vm592, %v527, 0.0
        %v601 = vsel %vm593, %v528, 0.0
        %v602 = vsel %vm594, %v529, 0.0
        %v603 = vsel %vm595, %v530, 0.0
        %v604 = vsel %vm596, %v531, 0.0
        %v605 = vsel %vm597, %v532, 0.0
        %v606 = vsel %vm598, %v525, 0.0
        %v607 = vsel %vm591, %v491, 0.0
        %v608 = vsel %vm592, %v492, 0.0
        %v609 = vsel %vm593, %v493, 0.0
        %v610 = vsel %vm594, %v494, 0.0
        %v611 = vsel %vm595, %v495, 0.0
        %v612 = vsel %vm596, %v496, 0.0
        %v613 = vsel %vm597, %v497, 0.0
        %v614 = vsel %vm598, %v490, 0.0
        %v615 = vsel %vm591, %v552, 0.0
        %v616 = vsel %vm592, %v553, 0.0
        %v617 = vsel %vm593, %v554, 0.0
        %v618 = vsel %vm594, %v555, 0.0
        %v619 = vsel %vm595, %v556, 0.0
        %v620 = vsel %vm596, %v557, 0.0
        %v621 = vsel %vm597, %v558, 0.0
        %v622 = vsel %vm598, %v551, 0.0
        %v623 = vpack.c.bf16 %v568, %v567
        %v624 = vpack.c.bf16 %v576, %v575
        %v625 = vpack.c.bf16 %v584, %v583
        %v626 = vpack.c.bf16 %v526, %v525
        %v627 = vpack.c.bf16 %v491, %v490
        %v628 = vpack.c.bf16 %v552, %v551
        %v629 = vpack.c.bf16 %v600, %v599
        %v630 = vpack.c.bf16 %v608, %v607
        %v631 = vpack.c.bf16 %v616, %v615
        %v632 = vpack.c.bf16 %v570, %v569
        %v633 = vpack.c.bf16 %v578, %v577
        %v634 = vpack.c.bf16 %v586, %v585
        %v635 = vpack.c.bf16 %v528, %v527
        %v636 = vpack.c.bf16 %v493, %v492
        %v637 = vpack.c.bf16 %v554, %v553
        %v638 = vpack.c.bf16 %v602, %v601
        %v639 = vpack.c.bf16 %v610, %v609
        %v640 = vpack.c.bf16 %v618, %v617
        %v641 = vpack.c.bf16 %v572, %v571
        %v642 = vpack.c.bf16 %v580, %v579
        %v643 = vpack.c.bf16 %v588, %v587
        %v644 = vpack.c.bf16 %v530, %v529
        %v645 = vpack.c.bf16 %v495, %v494
        %v646 = vpack.c.bf16 %v556, %v555
        %v647 = vpack.c.bf16 %v604, %v603
        %v648 = vpack.c.bf16 %v612, %v611
        %v649 = vpack.c.bf16 %v620, %v619
        %v650 = vpack.c.bf16 %v574, %v573
        %v651 = vpack.c.bf16 %v582, %v581
        %v652 = vpack.c.bf16 %v590, %v589
        %v653 = vpack.c.bf16 %v532, %v531
        %v654 = vpack.c.bf16 %v497, %v496
        %v655 = vpack.c.bf16 %v558, %v557
        %v656 = vpack.c.bf16 %v606, %v605
        %v657 = vpack.c.bf16 %v614, %v613
        %v658 = vpack.c.bf16 %v622, %v621
        %v659 = vld [vmem:[#allocation7] sm:$0xf]
        %v660 = vld [vmem:[#allocation7 + $0x4] sm:$0xf]
        %v661 = vld [vmem:[#allocation7 + $0x8] sm:$0xf]
        %v662 = vld [vmem:[#allocation7 + $0xc] sm:$0xf]
        %v663 = vld [vmem:[#allocation7 + $0x10] sm:$0xf]
        %v664 = vld [vmem:[#allocation7 + $0x14] sm:$0xf]
        %v665 = vld [vmem:[#allocation7 + $0x18] sm:$0xf]
        %v666 = vld [vmem:[#allocation7 + $0x1c] sm:$0xf]
        %v667 = vld [vmem:[#allocation7 + $0x20] sm:$0xf]
        %v668 = vld [vmem:[#allocation7 + $0x24] sm:$0xf]
        %v669 = vld [vmem:[#allocation7 + $0x28] sm:$0xf]
        %v670 = vld [vmem:[#allocation7 + $0x2c] sm:$0xf]
        %v671 = vld [vmem:[#allocation7 + $0x30] sm:$0xf]
        %v672 = vld [vmem:[#allocation7 + $0x34] sm:$0xf]
        %v673 = vld [vmem:[#allocation7 + $0x38] sm:$0xf]
        %v674 = vld [vmem:[#allocation7 + $0x3c] sm:$0xf]
        %v675 = vld [vmem:[#allocation7 + $0x40] sm:$0xf]
        %v676 = vld [vmem:[#allocation7 + $0x44] sm:$0xf]
        %v677 = vld [vmem:[#allocation7 + $0x48] sm:$0xf]
        %v678 = vld [vmem:[#allocation7 + $0x4c] sm:$0xf]
        %v679 = vld [vmem:[#allocation7 + $0x50] sm:$0xf]
        %v680 = vld [vmem:[#allocation7 + $0x54] sm:$0xf]
        %v681 = vld [vmem:[#allocation7 + $0x58] sm:$0xf]
        %v682 = vld [vmem:[#allocation7 + $0x5c] sm:$0xf]
        %v683 = vld [vmem:[#allocation7 + $0x60] sm:$0xf]
        %v684 = vld [vmem:[#allocation7 + $0x64] sm:$0xf]
        %v685 = vld [vmem:[#allocation7 + $0x68] sm:$0xf]
        %v686 = vld [vmem:[#allocation7 + $0x6c] sm:$0xf]
        %v687 = vld [vmem:[#allocation7 + $0x70] sm:$0xf]
        %v688 = vld [vmem:[#allocation7 + $0x74] sm:$0xf]
        %v689 = vld [vmem:[#allocation7 + $0x78] sm:$0xf]
        %v690 = vld [vmem:[#allocation7 + $0x7c] sm:$0xf]
        %v691 = vld [vmem:[#allocation7 + $0x80] sm:$0xf]
        %v692 = vld [vmem:[#allocation7 + $0x84] sm:$0xf]
        %v693 = vld [vmem:[#allocation7 + $0x88] sm:$0xf]
        %v694 = vld [vmem:[#allocation7 + $0x8c] sm:$0xf]
        %v695 = vld [vmem:[#allocation7 + $0x90] sm:$0xf]
        %v696 = vld [vmem:[#allocation7 + $0x94] sm:$0xf]
        %v697 = vld [vmem:[#allocation7 + $0x98] sm:$0xf]
        %v698 = vld [vmem:[#allocation7 + $0x9c] sm:$0xf]
        %v699 = vld [vmem:[#allocation7 + $0xa0] sm:$0xf]
        %v700 = vld [vmem:[#allocation7 + $0xa4] sm:$0xf]
        %v701 = vld [vmem:[#allocation7 + $0xa8] sm:$0xf]
        %v702 = vld [vmem:[#allocation7 + $0xac] sm:$0xf]
        %v703 = vld [vmem:[#allocation7 + $0xb0] sm:$0xf]
        %v704 = vld [vmem:[#allocation7 + $0xb4] sm:$0xf]
        %v705 = vld [vmem:[#allocation7 + $0xb8] sm:$0xf]
        %v706 = vld [vmem:[#allocation7 + $0xbc] sm:$0xf]
        %v707 = vld [vmem:[#allocation7 + $0xc0] sm:$0xf]
        %v708 = vld [vmem:[#allocation7 + $0xc4] sm:$0xf]
        %v709 = vld [vmem:[#allocation7 + $0xc8] sm:$0xf]
        %v710 = vld [vmem:[#allocation7 + $0xcc] sm:$0xf]
        %v711 = vld [vmem:[#allocation7 + $0xd0] sm:$0xf]
        %v712 = vld [vmem:[#allocation7 + $0xd4] sm:$0xf]
        %v713 = vld [vmem:[#allocation7 + $0xd8] sm:$0xf]
        %v714 = vld [vmem:[#allocation7 + $0xdc] sm:$0xf]
        %v715 = vld [vmem:[#allocation7 + $0xe0] sm:$0xf]
        %v716 = vld [vmem:[#allocation7 + $0xe4] sm:$0xf]
        %v717 = vld [vmem:[#allocation7 + $0xe8] sm:$0xf]
        %v718 = vld [vmem:[#allocation7 + $0xec] sm:$0xf]
        %v719 = vld [vmem:[#allocation7 + $0xf0] sm:$0xf]
        %v720 = vld [vmem:[#allocation7 + $0xf4] sm:$0xf]
        %v721 = vld [vmem:[#allocation7 + $0xf8] sm:$0xf]
        %v722 = vld [vmem:[#allocation7 + $0xfc] sm:$0xf]
        %v723 = vld [vmem:[#allocation7 + $0x100] sm:$0xf]
        %v724 = vld [vmem:[#allocation7 + $0x104] sm:$0xf]
        %v725 = vld [vmem:[#allocation7 + $0x108] sm:$0xf]
        %v726 = vld [vmem:[#allocation7 + $0x10c] sm:$0xf]
        %v727 = vld [vmem:[#allocation7 + $0x110] sm:$0xf]
        %v728 = vld [vmem:[#allocation7 + $0x114] sm:$0xf]
        %v729 = vld [vmem:[#allocation7 + $0x118] sm:$0xf]
        %v730 = vld [vmem:[#allocation7 + $0x11c] sm:$0xf]
        %v731 = vld [vmem:[#allocation7 + $0x120] sm:$0xf]
        %v732 = vld [vmem:[#allocation7 + $0x124] sm:$0xf]
        %v733 = vld [vmem:[#allocation7 + $0x128] sm:$0xf]
        %v734 = vld [vmem:[#allocation7 + $0x12c] sm:$0xf]
        %v735 = vld [vmem:[#allocation7 + $0x130] sm:$0xf]
        %v736 = vld [vmem:[#allocation7 + $0x134] sm:$0xf]
        %v737 = vld [vmem:[#allocation7 + $0x138] sm:$0xf]
        %v738 = vld [vmem:[#allocation7 + $0x13c] sm:$0xf]
        %v739 = vld [vmem:[#allocation7 + $0x140] sm:$0xf]
        %v740 = vld [vmem:[#allocation7 + $0x144] sm:$0xf]
        %v741 = vld [vmem:[#allocation7 + $0x148] sm:$0xf]
        %v742 = vld [vmem:[#allocation7 + $0x14c] sm:$0xf]
        %v743 = vld [vmem:[#allocation7 + $0x150] sm:$0xf]
        %v744 = vld [vmem:[#allocation7 + $0x154] sm:$0xf]
        %v745 = vld [vmem:[#allocation7 + $0x158] sm:$0xf]
        %v746 = vld [vmem:[#allocation7 + $0x15c] sm:$0xf]
        %v747 = vld [vmem:[#allocation7 + $0x160] sm:$0xf]
        %v748 = vld [vmem:[#allocation7 + $0x164] sm:$0xf]
        %v749 = vld [vmem:[#allocation7 + $0x168] sm:$0xf]
        %v750 = vld [vmem:[#allocation7 + $0x16c] sm:$0xf]
        %v751 = vld [vmem:[#allocation7 + $0x170] sm:$0xf]
        %v752 = vld [vmem:[#allocation7 + $0x174] sm:$0xf]
        %v753 = vld [vmem:[#allocation7 + $0x178] sm:$0xf]
        %v754 = vld [vmem:[#allocation7 + $0x17c] sm:$0xf]
        %v755 = vld [vmem:[#allocation7 + $0x180] sm:$0xf]
        %v756 = vld [vmem:[#allocation7 + $0x184] sm:$0xf]
        %v757 = vld [vmem:[#allocation7 + $0x188] sm:$0xf]
        %v758 = vld [vmem:[#allocation7 + $0x18c] sm:$0xf]
        %v759 = vld [vmem:[#allocation7 + $0x190] sm:$0xf]
        %v760 = vld [vmem:[#allocation7 + $0x194] sm:$0xf]
        %v761 = vld [vmem:[#allocation7 + $0x198] sm:$0xf]
        %v762 = vld [vmem:[#allocation7 + $0x19c] sm:$0xf]
        %v763 = vld [vmem:[#allocation7 + $0x1a0] sm:$0xf]
        %v764 = vld [vmem:[#allocation7 + $0x1a4] sm:$0xf]
        %v765 = vld [vmem:[#allocation7 + $0x1a8] sm:$0xf]
        %v766 = vld [vmem:[#allocation7 + $0x1ac] sm:$0xf]
        %v767 = vld [vmem:[#allocation7 + $0x1b0] sm:$0xf]
        %v768 = vld [vmem:[#allocation7 + $0x1b4] sm:$0xf]
        %v769 = vld [vmem:[#allocation7 + $0x1b8] sm:$0xf]
        %v770 = vld [vmem:[#allocation7 + $0x1bc] sm:$0xf]
        %v771 = vld [vmem:[#allocation7 + $0x1c0] sm:$0xf]
        %v772 = vld [vmem:[#allocation7 + $0x1c4] sm:$0xf]
        %v773 = vld [vmem:[#allocation7 + $0x1c8] sm:$0xf]
        %v774 = vld [vmem:[#allocation7 + $0x1cc] sm:$0xf]
        %v775 = vld [vmem:[#allocation7 + $0x1d0] sm:$0xf]
        %v776 = vld [vmem:[#allocation7 + $0x1d4] sm:$0xf]
        %v777 = vld [vmem:[#allocation7 + $0x1d8] sm:$0xf]
        %v778 = vld [vmem:[#allocation7 + $0x1dc] sm:$0xf]
        %v779 = vld [vmem:[#allocation7 + $0x1e0] sm:$0xf]
        %v780 = vld [vmem:[#allocation7 + $0x1e4] sm:$0xf]
        %v781 = vld [vmem:[#allocation7 + $0x1e8] sm:$0xf]
        %v782 = vld [vmem:[#allocation7 + $0x1ec] sm:$0xf]
        %v783 = vld [vmem:[#allocation7 + $0x1f0] sm:$0xf]
        %v784 = vld [vmem:[#allocation7 + $0x1f4] sm:$0xf]
        %v785 = vld [vmem:[#allocation7 + $0x1f8] sm:$0xf]
        %v786 = vld [vmem:[#allocation7 + $0x1fc] sm:$0xf]
        %v787 = vld [vmem:[#allocation7 + $0x200] sm:$0xf]
        %v788 = vld [vmem:[#allocation7 + $0x204] sm:$0xf]
        %v789 = vld [vmem:[#allocation7 + $0x208] sm:$0xf]
        %v790 = vld [vmem:[#allocation7 + $0x20c] sm:$0xf]
        %v791 = vld [vmem:[#allocation7 + $0x210] sm:$0xf]
        %v792 = vld [vmem:[#allocation7 + $0x214] sm:$0xf]
        %v793 = vld [vmem:[#allocation7 + $0x218] sm:$0xf]
        %v794 = vld [vmem:[#allocation7 + $0x21c] sm:$0xf]
        %v795 = vld [vmem:[#allocation7 + $0x220] sm:$0xf]
        %v796 = vld [vmem:[#allocation7 + $0x224] sm:$0xf]
        %v797 = vld [vmem:[#allocation7 + $0x228] sm:$0xf]
        %v798 = vld [vmem:[#allocation7 + $0x22c] sm:$0xf]
        %v799 = vld [vmem:[#allocation7 + $0x230] sm:$0xf]
        %v800 = vld [vmem:[#allocation7 + $0x234] sm:$0xf]
        %v801 = vld [vmem:[#allocation7 + $0x238] sm:$0xf]
        %v802 = vld [vmem:[#allocation7 + $0x23c] sm:$0xf]
        %v803 = vld [vmem:[%s4] sm:$0x1]
        %v805 = vlaneseq
        %v806 = vshrl.u32 %v805, 7
        %v807 = vsub.s32 0, %v806
        %v808 = vrot.slane %v803, %v807
        %v954 = vunpack.c.l.b16 %v659
        %v955 = vunpack.c.l.b16 %v660
        %v956 = vunpack.c.l.b16 %v661
        %v957 = vunpack.c.l.b16 %v662
        %v958 = vunpack.c.l.b16 %v663
        %v959 = vunpack.c.l.b16 %v664
        %v960 = vunpack.c.l.b16 %v665
        %v961 = vunpack.c.l.b16 %v666
        %v962 = vunpack.c.l.b16 %v667
        %v963 = vunpack.c.l.b16 %v668
        %v964 = vunpack.c.l.b16 %v669
        %v965 = vunpack.c.l.b16 %v670
        %v966 = vunpack.c.l.b16 %v671
        %v967 = vunpack.c.l.b16 %v672
        %v968 = vunpack.c.l.b16 %v673
        %v969 = vunpack.c.l.b16 %v674
        %v970 = vunpack.c.l.b16 %v675
        %v971 = vunpack.c.l.b16 %v676
        %v972 = vunpack.c.l.b16 %v677
        %v973 = vunpack.c.l.b16 %v678
        %v974 = vunpack.c.l.b16 %v679
        %v975 = vunpack.c.l.b16 %v680
        %v976 = vunpack.c.l.b16 %v681
        %v977 = vunpack.c.l.b16 %v682
        %v978 = vunpack.c.l.b16 %v683
        %v979 = vunpack.c.l.b16 %v684
        %v980 = vunpack.c.l.b16 %v685
        %v981 = vunpack.c.l.b16 %v686
        %v982 = vunpack.c.l.b16 %v687
        %v983 = vunpack.c.l.b16 %v688
        %v984 = vunpack.c.l.b16 %v689
        %v985 = vunpack.c.l.b16 %v690
        %v986 = vunpack.c.l.b16 %v691
        %v987 = vunpack.c.l.b16 %v692
        %v988 = vunpack.c.l.b16 %v693
        %v989 = vunpack.c.l.b16 %v694
        %v990 = vunpack.c.l.b16 %v695
        %v991 = vunpack.c.l.b16 %v696
        %v992 = vunpack.c.l.b16 %v697
        %v993 = vunpack.c.l.b16 %v698
        %v994 = vunpack.c.l.b16 %v699
        %v995 = vunpack.c.l.b16 %v700
        %v996 = vunpack.c.l.b16 %v701
        %v997 = vunpack.c.l.b16 %v702
        %v998 = vunpack.c.l.b16 %v703
        %v999 = vunpack.c.l.b16 %v704
        %v1000 = vunpack.c.l.b16 %v705
        %v1001 = vunpack.c.l.b16 %v706
        %v1002 = vunpack.c.l.b16 %v707
        %v1003 = vunpack.c.l.b16 %v708
        %v1004 = vunpack.c.l.b16 %v709
        %v1005 = vunpack.c.l.b16 %v710
        %v1006 = vunpack.c.l.b16 %v711
        %v1007 = vunpack.c.l.b16 %v712
        %v1008 = vunpack.c.l.b16 %v713
        %v1009 = vunpack.c.l.b16 %v714
        %v1010 = vunpack.c.l.b16 %v715
        %v1011 = vunpack.c.l.b16 %v716
        %v1012 = vunpack.c.l.b16 %v717
        %v1013 = vunpack.c.l.b16 %v718
        %v1014 = vunpack.c.l.b16 %v719
        %v1015 = vunpack.c.l.b16 %v720
        %v1016 = vunpack.c.l.b16 %v721
        %v1017 = vunpack.c.l.b16 %v722
        %v1018 = vunpack.c.l.b16 %v723
        %v1019 = vunpack.c.l.b16 %v724
        %v1020 = vunpack.c.l.b16 %v725
        %v1021 = vunpack.c.l.b16 %v726
        %v1022 = vunpack.c.l.b16 %v727
        %v1023 = vunpack.c.l.b16 %v728
        %v1024 = vunpack.c.l.b16 %v729
        %v1025 = vunpack.c.l.b16 %v730
        %v1026 = vunpack.c.l.b16 %v731
        %v1027 = vunpack.c.l.b16 %v732
        %v1028 = vunpack.c.l.b16 %v733
        %v1029 = vunpack.c.l.b16 %v734
        %v1030 = vunpack.c.l.b16 %v735
        %v1031 = vunpack.c.l.b16 %v736
        %v1032 = vunpack.c.l.b16 %v737
        %v1033 = vunpack.c.l.b16 %v738
        %v1034 = vunpack.c.l.b16 %v739
        %v1035 = vunpack.c.l.b16 %v740
        %v1036 = vunpack.c.l.b16 %v741
        %v1037 = vunpack.c.l.b16 %v742
        %v1038 = vunpack.c.l.b16 %v743
        %v1039 = vunpack.c.l.b16 %v744
        %v1040 = vunpack.c.l.b16 %v745
        %v1041 = vunpack.c.l.b16 %v746
        %v1042 = vunpack.c.l.b16 %v747
        %v1043 = vunpack.c.l.b16 %v748
        %v1044 = vunpack.c.l.b16 %v749
        %v1045 = vunpack.c.l.b16 %v750
        %v1046 = vunpack.c.l.b16 %v751
        %v1047 = vunpack.c.l.b16 %v752
        %v1048 = vunpack.c.l.b16 %v753
        %v1049 = vunpack.c.l.b16 %v754
        %v1050 = vunpack.c.l.b16 %v755
        %v1051 = vunpack.c.l.b16 %v756
        %v1052 = vunpack.c.l.b16 %v757
        %v1053 = vunpack.c.l.b16 %v758
        %v1054 = vunpack.c.l.b16 %v759
        %v1055 = vunpack.c.l.b16 %v760
        %v1056 = vunpack.c.l.b16 %v761
        %v1057 = vunpack.c.l.b16 %v762
        %v1058 = vunpack.c.l.b16 %v763
        %v1059 = vunpack.c.l.b16 %v764
        %v1060 = vunpack.c.l.b16 %v765
        %v1061 = vunpack.c.l.b16 %v766
        %v1062 = vunpack.c.l.b16 %v767
        %v1063 = vunpack.c.l.b16 %v768
        %v1064 = vunpack.c.l.b16 %v769
        %v1065 = vunpack.c.l.b16 %v770
        %v1066 = vunpack.c.l.b16 %v771
        %v1067 = vunpack.c.l.b16 %v772
        %v1068 = vunpack.c.l.b16 %v773
        %v1069 = vunpack.c.l.b16 %v774
        %v1070 = vunpack.c.l.b16 %v775
        %v1071 = vunpack.c.l.b16 %v776
        %v1072 = vunpack.c.l.b16 %v777
        %v1073 = vunpack.c.l.b16 %v778
        %v1074 = vunpack.c.l.b16 %v779
        %v1075 = vunpack.c.l.b16 %v780
        %v1076 = vunpack.c.l.b16 %v781
        %v1077 = vunpack.c.l.b16 %v782
        %v1078 = vunpack.c.l.b16 %v783
        %v1079 = vunpack.c.l.b16 %v784
        %v1080 = vunpack.c.l.b16 %v785
        %v1081 = vunpack.c.l.b16 %v786
        %v1082 = vunpack.c.l.b16 %v787
        %v1083 = vunpack.c.l.b16 %v788
        %v1084 = vunpack.c.l.b16 %v789
        %v1085 = vunpack.c.l.b16 %v790
        %v1086 = vunpack.c.l.b16 %v791
        %v1087 = vunpack.c.l.b16 %v792
        %v1088 = vunpack.c.l.b16 %v793
        %v1089 = vunpack.c.l.b16 %v794
        %v1090 = vunpack.c.l.b16 %v795
        %v1091 = vunpack.c.l.b16 %v796
        %v1092 = vunpack.c.l.b16 %v797
        %v1093 = vunpack.c.l.b16 %v798
        %v1094 = vunpack.c.l.b16 %v799
        %v1095 = vunpack.c.l.b16 %v800
        %v1096 = vunpack.c.l.b16 %v801
        %v1097 = vunpack.c.l.b16 %v802
        %v1098 = vpack.c.b16 %v955, %v954
        %v1099 = vpack.c.b16 %v957, %v956
        %v1100 = vpack.c.b16 %v959, %v958
        %v1101 = vpack.c.b16 %v961, %v960
        %v1102 = vpack.c.b16 %v963, %v962
        %v1103 = vpack.c.b16 %v965, %v964
        %v1104 = vpack.c.b16 %v967, %v966
        %v1105 = vpack.c.b16 %v969, %v968
        %v1106 = vpack.c.b16 %v971, %v970
        %v1107 = vpack.c.b16 %v973, %v972
        %v1108 = vpack.c.b16 %v975, %v974
        %v1109 = vpack.c.b16 %v977, %v976
        %v1110 = vpack.c.b16 %v979, %v978
        %v1111 = vpack.c.b16 %v981, %v980
        %v1112 = vpack.c.b16 %v983, %v982
        %v1113 = vpack.c.b16 %v985, %v984
        %v1114 = vpack.c.b16 %v987, %v986
        %v1115 = vpack.c.b16 %v989, %v988
        %v1116 = vpack.c.b16 %v991, %v990
        %v1117 = vpack.c.b16 %v993, %v992
        %v1118 = vpack.c.b16 %v995, %v994
        %v1119 = vpack.c.b16 %v997, %v996
        %v1120 = vpack.c.b16 %v999, %v998
        %v1121 = vpack.c.b16 %v1001, %v1000
        %v1122 = vpack.c.b16 %v1003, %v1002
        %v1123 = vpack.c.b16 %v1005, %v1004
        %v1124 = vpack.c.b16 %v1007, %v1006
        %v1125 = vpack.c.b16 %v1009, %v1008
        %v1126 = vpack.c.b16 %v1011, %v1010
        %v1127 = vpack.c.b16 %v1013, %v1012
        %v1128 = vpack.c.b16 %v1015, %v1014
        %v1129 = vpack.c.b16 %v1017, %v1016
        %v1130 = vpack.c.b16 %v1019, %v1018
        %v1131 = vpack.c.b16 %v1021, %v1020
        %v1132 = vpack.c.b16 %v1023, %v1022
        %v1133 = vpack.c.b16 %v1025, %v1024
        %v1134 = vpack.c.b16 %v1027, %v1026
        %v1135 = vpack.c.b16 %v1029, %v1028
        %v1136 = vpack.c.b16 %v1031, %v1030
        %v1137 = vpack.c.b16 %v1033, %v1032
        %v1138 = vpack.c.b16 %v1035, %v1034
        %v1139 = vpack.c.b16 %v1037, %v1036
        %v1140 = vpack.c.b16 %v1039, %v1038
        %v1141 = vpack.c.b16 %v1041, %v1040
        %v1142 = vpack.c.b16 %v1043, %v1042
        %v1143 = vpack.c.b16 %v1045, %v1044
        %v1144 = vpack.c.b16 %v1047, %v1046
        %v1145 = vpack.c.b16 %v1049, %v1048
        %v1146 = vpack.c.b16 %v1051, %v1050
        %v1147 = vpack.c.b16 %v1053, %v1052
        %v1148 = vpack.c.b16 %v1055, %v1054
        %v1149 = vpack.c.b16 %v1057, %v1056
        %v1150 = vpack.c.b16 %v1059, %v1058
        %v1151 = vpack.c.b16 %v1061, %v1060
        %v1152 = vpack.c.b16 %v1063, %v1062
        %v1153 = vpack.c.b16 %v1065, %v1064
        %v1154 = vpack.c.b16 %v1067, %v1066
        %v1155 = vpack.c.b16 %v1069, %v1068
        %v1156 = vpack.c.b16 %v1071, %v1070
        %v1157 = vpack.c.b16 %v1073, %v1072
        %v1158 = vpack.c.b16 %v1075, %v1074
        %v1159 = vpack.c.b16 %v1077, %v1076
        %v1160 = vpack.c.b16 %v1079, %v1078
        %v1161 = vpack.c.b16 %v1081, %v1080
        %v1162 = vpack.c.b16 %v1083, %v1082
        %v1163 = vpack.c.b16 %v1085, %v1084
        %v1164 = vpack.c.b16 %v1087, %v1086
        %v1165 = vpack.c.b16 %v1089, %v1088
        %v1166 = vpack.c.b16 %v1091, %v1090
        %v1167 = vpack.c.b16 %v1093, %v1092
        %v1168 = vpack.c.b16 %v1095, %v1094
        %v1169 = vpack.c.b16 %v1097, %v1096
        %1242 = vmatprep.subr.bf16.mxu0 0
        %1243 = vmatpush1.bf16.msra.mxu0 %v1098
        %1244 = vmatprep.subr.bf16.mxu0 0
        %1245 = vmatpush1.bf16.msra.mxu0 %v1099
        %1246 = vmatprep.subr.bf16.mxu0 0
        %1247 = vmatpush1.bf16.msra.mxu0 %v1100
        %1248 = vmatprep.subr.bf16.mxu0 0
        %1249 = vmatpush1.bf16.msra.mxu0 %v1101
        %1250 = vmatprep.subr.bf16.mxu0 0
        %1251 = vmatpush1.bf16.msra.mxu0 %v1102
        %1252 = vmatprep.subr.bf16.mxu0 0
        %1253 = vmatpush1.bf16.msra.mxu0 %v1103
        %1254 = vmatprep.subr.bf16.mxu0 0
        %1255 = vmatpush1.bf16.msra.mxu0 %v1104
        %1256 = vmatprep.subr.bf16.mxu0 0
        %1257 = vmatpush1.bf16.msra.mxu0 %v1105
        %1258 = vmatprep.subr.bf16.mxu0 0
        %1259 = vmatpush1.bf16.msra.mxu0 %v1106
        %1260 = vmatprep.subr.bf16.mxu0 0
        %1261 = vmatpush1.bf16.msra.mxu0 %v1107
        %1262 = vmatprep.subr.bf16.mxu0 0
        %1263 = vmatpush1.bf16.msra.mxu0 %v1108
        %1264 = vmatprep.subr.bf16.mxu0 0
        %1265 = vmatpush1.bf16.msra.mxu0 %v1109
        %1266 = vmatprep.subr.bf16.mxu0 0
        %1267 = vmatpush1.bf16.msra.mxu0 %v1110
        %1268 = vmatprep.subr.bf16.mxu0 0
        %1269 = vmatpush1.bf16.msra.mxu0 %v1111
        %1270 = vmatprep.subr.bf16.mxu0 0
        %1271 = vmatpush1.bf16.msra.mxu0 %v1112
        %1272 = vmatprep.subr.bf16.mxu0 0
        %1273 = vmatpush1.bf16.msra.mxu0 %v1113
        %1274 = vmatprep.mubr.bf16.mxu0 %v624
        %1275 = vmatmul.mubr.bf16.gmra.mrb[0].mxu0 %v623
        %v1276 = vpop.f32.mrb[0].mxu0
        %v1277 = vadd.f32 %v808, %v1276
        %v1278 = vpop.f32.mrb[0].mxu0
        %v1279 = vpop.f32.mrb[0].mxu0
        %v1280 = vadd.f32 %v808, %v1279
        %v1281 = vpop.f32.mrb[0].mxu0
        %1282 = vmatprep.mubr.bf16.mxu0 %v633
        %1283 = vmatmul.mubr.bf16.gmra.mrb[0].mxu0 %v632
        %v1284 = vpop.f32.mrb[0].mxu0
        %v1285 = vadd.f32 %v808, %v1284
        %v1286 = vpop.f32.mrb[0].mxu0
        %v1287 = vpop.f32.mrb[0].mxu0
        %v1288 = vadd.f32 %v808, %v1287
        %v1289 = vpop.f32.mrb[0].mxu0
        %1290 = vmatprep.mubr.bf16.mxu0 %v642
        %1291 = vmatmul.mubr.bf16.gmra.mrb[0].mxu0 %v641
        %v1292 = vpop.f32.mrb[0].mxu0
        %v1293 = vadd.f32 %v808, %v1292
        %v1294 = vpop.f32.mrb[0].mxu0
        %v1295 = vpop.f32.mrb[0].mxu0
        %v1296 = vadd.f32 %v808, %v1295
        %v1297 = vpop.f32.mrb[0].mxu0
        %1298 = vmatprep.mubr.bf16.mxu0 %v651
        %1299 = vmatmul.mubr.bf16.gmra.mrb[0].mxu0 %v650
        %v1300 = vpop.f32.mrb[0].mxu0
        %v1301 = vadd.f32 %v808, %v1300
        %v1302 = vpop.f32.mrb[0].mxu0
        %v1303 = vpop.f32.mrb[0].mxu0
        %v1304 = vadd.f32 %v808, %v1303
        %v1305 = vpop.f32.mrb[0].mxu0
        %1306 = vdwg.mxu0
        %1307 = vmatprep.subr.bf16.mxu0 0
        %1308 = vmatpush1.bf16.msra.mxu0 %v1114
        %1309 = vmatprep.subr.bf16.mxu0 0
        %1310 = vmatpush1.bf16.msra.mxu0 %v1115
        %1311 = vmatprep.subr.bf16.mxu0 0
        %1312 = vmatpush1.bf16.msra.mxu0 %v1116
        %1313 = vmatprep.subr.bf16.mxu0 0
        %1314 = vmatpush1.bf16.msra.mxu0 %v1117
        %1315 = vmatprep.subr.bf16.mxu0 0
        %1316 = vmatpush1.bf16.msra.mxu0 %v1118
        %1317 = vmatprep.subr.bf16.mxu0 0
        %1318 = vmatpush1.bf16.msra.mxu0 %v1119
        %1319 = vmatprep.subr.bf16.mxu0 0
        %1320 = vmatpush1.bf16.msra.mxu0 %v1120
        %1321 = vmatprep.subr.bf16.mxu0 0
        %1322 = vmatpush1.bf16.msra.mxu0 %v1121
        %1323 = vmatprep.subr.bf16.mxu0 0
        %1324 = vmatpush1.bf16.msra.mxu0 %v1122
        %1325 = vmatprep.subr.bf16.mxu0 0
        %1326 = vmatpush1.bf16.msra.mxu0 %v1123
        %1327 = vmatprep.subr.bf16.mxu0 0
        %1328 = vmatpush1.bf16.msra.mxu0 %v1124
        %1329 = vmatprep.subr.bf16.mxu0 0
        %1330 = vmatpush1.bf16.msra.mxu0 %v1125
        %1331 = vmatprep.subr.bf16.mxu0 0
        %1332 = vmatpush1.bf16.msra.mxu0 %v1126
        %1333 = vmatprep.subr.bf16.mxu0 0
        %1334 = vmatpush1.bf16.msra.mxu0 %v1127
        %1335 = vmatprep.subr.bf16.mxu0 0
        %1336 = vmatpush1.bf16.msra.mxu0 %v1128
        %1337 = vmatprep.subr.bf16.mxu0 0
        %1338 = vmatpush1.bf16.msra.mxu0 %v1129
        %1339 = vmatprep.mubr.bf16.mxu0 %v626
        %1340 = vmatmul.mubr.bf16.gmra.mrb[0].mxu0 %v625
        %v1341 = vpop.f32.mrb[0].mxu0
        %v1342 = vadd.f32 %v1277, %v1341
        %v1343 = vpop.f32.mrb[0].mxu0
        %v1344 = vpop.f32.mrb[0].mxu0
        %v1345 = vadd.f32 %v1280, %v1344
        %v1346 = vpop.f32.mrb[0].mxu0
        %1347 = vmatprep.mubr.bf16.mxu0 %v635
        %1348 = vmatmul.mubr.bf16.gmra.mrb[0].mxu0 %v634
        %v1349 = vpop.f32.mrb[0].mxu0
        %v1350 = vadd.f32 %v1285, %v1349
        %v1351 = vpop.f32.mrb[0].mxu0
        %v1352 = vpop.f32.mrb[0].mxu0
        %v1353 = vadd.f32 %v1288, %v1352
        %v1354 = vpop.f32.mrb[0].mxu0
        %1355 = vmatprep.mubr.bf16.mxu0 %v644
        %1356 = vmatmul.mubr.bf16.gmra.mrb[0].mxu0 %v643
        %v1357 = vpop.f32.mrb[0].mxu0
        %v1358 = vadd.f32 %v1293, %v1357
        %v1359 = vpop.f32.mrb[0].mxu0
        %v1360 = vpop.f32.mrb[0].mxu0
        %v1361 = vadd.f32 %v1296, %v1360
        %v1362 = vpop.f32.mrb[0].mxu0
        %1363 = vmatprep.mubr.bf16.mxu0 %v653
        %1364 = vmatmul.mubr.bf16.gmra.mrb[0].mxu0 %v652
        %v1365 = vpop.f32.mrb[0].mxu0
        %v1366 = vadd.f32 %v1301, %v1365
        %v1367 = vpop.f32.mrb[0].mxu0
        %v1368 = vpop.f32.mrb[0].mxu0
        %v1369 = vadd.f32 %v1304, %v1368
        %v1370 = vpop.f32.mrb[0].mxu0
        %1371 = vdwg.mxu0
        %1372 = vmatprep.subr.bf16.mxu0 0
        %1373 = vmatpush1.bf16.msra.mxu0 %v1130
        %1374 = vmatprep.subr.bf16.mxu0 0
        %1375 = vmatpush1.bf16.msra.mxu0 %v1131
        %1376 = vmatprep.subr.bf16.mxu0 0
        %1377 = vmatpush1.bf16.msra.mxu0 %v1132
        %1378 = vmatprep.subr.bf16.mxu0 0
        %1379 = vmatpush1.bf16.msra.mxu0 %v1133
        %1380 = vmatprep.subr.bf16.mxu0 0
        %1381 = vmatpush1.bf16.msra.mxu0 %v1134
        %1382 = vmatprep.subr.bf16.mxu0 0
        %1383 = vmatpush1.bf16.msra.mxu0 %v1135
        %1384 = vmatprep.subr.bf16.mxu0 0
        %1385 = vmatpush1.bf16.msra.mxu0 %v1136
        %1386 = vmatprep.subr.bf16.mxu0 0
        %1387 = vmatpush1.bf16.msra.mxu0 %v1137
        %1388 = vmatprep.subr.bf16.mxu0 0
        %1389 = vmatpush1.bf16.msra.mxu0 %v1138
        %1390 = vmatprep.subr.bf16.mxu0 0
        %1391 = vmatpush1.bf16.msra.mxu0 %v1139
        %1392 = vmatprep.subr.bf16.mxu0 0
        %1393 = vmatpush1.bf16.msra.mxu0 %v1140
        %1394 = vmatprep.subr.bf16.mxu0 0
        %1395 = vmatpush1.bf16.msra.mxu0 %v1141
        %1396 = vmatprep.subr.bf16.mxu0 0
        %1397 = vmatpush1.bf16.msra.mxu0 %v1142
        %1398 = vmatprep.subr.bf16.mxu0 0
        %1399 = vmatpush1.bf16.msra.mxu0 %v1143
        %1400 = vmatprep.subr.bf16.mxu0 0
        %1401 = vmatpush1.bf16.msra.mxu0 %v1144
        %1402 = vmatprep.subr.bf16.mxu0 0
        %1403 = vmatpush1.bf16.msra.mxu0 %v1145
        %1404 = vmatprep.mubr.bf16.mxu0 %v628
        %1405 = vmatmul.mubr.bf16.gmra.mrb[0].mxu0 %v627
        %v1406 = vpop.f32.mrb[0].mxu0
        %v1407 = vadd.f32 %v1342, %v1406
        %v1408 = vpop.f32.mrb[0].mxu0
        %v1409 = vpop.f32.mrb[0].mxu0
        %v1410 = vadd.f32 %v1345, %v1409
        %v1411 = vpop.f32.mrb[0].mxu0
        %1412 = vmatprep.mubr.bf16.mxu0 %v637
        %1413 = vmatmul.mubr.bf16.gmra.mrb[0].mxu0 %v636
        %v1414 = vpop.f32.mrb[0].mxu0
        %v1415 = vadd.f32 %v1350, %v1414
        %v1416 = vpop.f32.mrb[0].mxu0
        %v1417 = vpop.f32.mrb[0].mxu0
        %v1418 = vadd.f32 %v1353, %v1417
        %v1419 = vpop.f32.mrb[0].mxu0
        %1420 = vmatprep.mubr.bf16.mxu0 %v646
        %1421 = vmatmul.mubr.bf16.gmra.mrb[0].mxu0 %v645
        %v1422 = vpop.f32.mrb[0].mxu0
        %v1423 = vadd.f32 %v1358, %v1422
        %v1424 = vpop.f32.mrb[0].mxu0
        %v1425 = vpop.f32.mrb[0].mxu0
        %v1426 = vadd.f32 %v1361, %v1425
        %v1427 = vpop.f32.mrb[0].mxu0
        %1428 = vmatprep.mubr.bf16.mxu0 %v655
        %1429 = vmatmul.mubr.bf16.gmra.mrb[0].mxu0 %v654
        %v1430 = vpop.f32.mrb[0].mxu0
        %v1431 = vadd.f32 %v1366, %v1430
        %v1432 = vpop.f32.mrb[0].mxu0
        %v1433 = vpop.f32.mrb[0].mxu0
        %v1434 = vadd.f32 %v1369, %v1433
        %v1435 = vpop.f32.mrb[0].mxu0
        %1436 = vdwg.mxu0
        %1437 = vmatprep.subr.bf16.mxu0 0
        %1438 = vmatpush1.bf16.msra.mxu0 %v1146
        %1439 = vmatprep.subr.bf16.mxu0 0
        %1440 = vmatpush1.bf16.msra.mxu0 %v1147
        %1441 = vmatprep.subr.bf16.mxu0 0
        %1442 = vmatpush1.bf16.msra.mxu0 %v1148
        %1443 = vmatprep.subr.bf16.mxu0 0
        %1444 = vmatpush1.bf16.msra.mxu0 %v1149
        %1445 = vmatprep.subr.bf16.mxu0 0
        %1446 = vmatpush1.bf16.msra.mxu0 %v1150
        %1447 = vmatprep.subr.bf16.mxu0 0
        %1448 = vmatpush1.bf16.msra.mxu0 %v1151
        %1449 = vmatprep.subr.bf16.mxu0 0
        %1450 = vmatpush1.bf16.msra.mxu0 %v1152
        %1451 = vmatprep.subr.bf16.mxu0 0
        %1452 = vmatpush1.bf16.msra.mxu0 %v1153
        %1453 = vmatprep.subr.bf16.mxu0 0
        %1454 = vmatpush1.bf16.msra.mxu0 %v1154
        %1455 = vmatprep.subr.bf16.mxu0 0
        %1456 = vmatpush1.bf16.msra.mxu0 %v1155
        %1457 = vmatprep.subr.bf16.mxu0 0
        %1458 = vmatpush1.bf16.msra.mxu0 %v1156
        %1459 = vmatprep.subr.bf16.mxu0 0
        %1460 = vmatpush1.bf16.msra.mxu0 %v1157
        %1461 = vmatprep.subr.bf16.mxu0 0
        %1462 = vmatpush1.bf16.msra.mxu0 %v1158
        %1463 = vmatprep.subr.bf16.mxu0 0
        %1464 = vmatpush1.bf16.msra.mxu0 %v1159
        %1465 = vmatprep.subr.bf16.mxu0 0
        %1466 = vmatpush1.bf16.msra.mxu0 %v1160
        %1467 = vmatprep.subr.bf16.mxu0 0
        %1468 = vmatpush1.bf16.msra.mxu0 %v1161
        %1469 = vmatprep.mubr.bf16.mxu0 %v630
        %1470 = vmatmul.mubr.bf16.gmra.mrb[0].mxu0 %v629
        %v1471 = vpop.f32.mrb[0].mxu0
        %v1472 = vadd.f32 %v1407, %v1471
        %v1473 = vpop.f32.mrb[0].mxu0
        %v1474 = vpop.f32.mrb[0].mxu0
        %v1475 = vadd.f32 %v1410, %v1474
        %v1476 = vpop.f32.mrb[0].mxu0
        %1477 = vmatprep.mubr.bf16.mxu0 %v639
        %1478 = vmatmul.mubr.bf16.gmra.mrb[0].mxu0 %v638
        %v1479 = vpop.f32.mrb[0].mxu0
        %v1480 = vadd.f32 %v1415, %v1479
        %v1481 = vpop.f32.mrb[0].mxu0
        %v1482 = vpop.f32.mrb[0].mxu0
        %v1483 = vadd.f32 %v1418, %v1482
        %v1484 = vpop.f32.mrb[0].mxu0
        %1485 = vmatprep.mubr.bf16.mxu0 %v648
        %1486 = vmatmul.mubr.bf16.gmra.mrb[0].mxu0 %v647
        %v1487 = vpop.f32.mrb[0].mxu0
        %v1488 = vadd.f32 %v1423, %v1487
        %v1489 = vpop.f32.mrb[0].mxu0
        %v1490 = vpop.f32.mrb[0].mxu0
        %v1491 = vadd.f32 %v1426, %v1490
        %v1492 = vpop.f32.mrb[0].mxu0
        %1493 = vmatprep.mubr.bf16.mxu0 %v657
        %1494 = vmatmul.mubr.bf16.gmra.mrb[0].mxu0 %v656
        %v1495 = vpop.f32.mrb[0].mxu0
        %v1496 = vadd.f32 %v1431, %v1495
        %v1497 = vpop.f32.mrb[0].mxu0
        %v1498 = vpop.f32.mrb[0].mxu0
        %v1499 = vadd.f32 %v1434, %v1498
        %v1500 = vpop.f32.mrb[0].mxu0
        %1501 = vdwg.mxu0
        %1502 = vmatprep.subr.bf16.mxu0 0
        %1503 = vmatpush1.bf16.msra.mxu0 %v1162
        %1504 = vmatprep.subr.bf16.mxu0 0
        %1505 = vmatpush1.bf16.msra.mxu0 %v1163
        %1506 = vmatprep.subr.bf16.mxu0 0
        %1507 = vmatpush1.bf16.msra.mxu0 %v1164
        %1508 = vmatprep.subr.bf16.mxu0 0
        %1509 = vmatpush1.bf16.msra.mxu0 %v1165
        %1510 = vmatprep.subr.bf16.mxu0 0
        %1511 = vmatpush1.bf16.msra.mxu0 %v1166
        %1512 = vmatprep.subr.bf16.mxu0 0
        %1513 = vmatpush1.bf16.msra.mxu0 %v1167
        %1514 = vmatprep.subr.bf16.mxu0 0
        %1515 = vmatpush1.bf16.msra.mxu0 %v1168
        %1516 = vmatprep.subr.bf16.mxu0 0
        %1517 = vmatpush1.bf16.msra.mxu0 %v1169
        %1518 = vmatprep.subr.bf16.mxu0 0
        %1519 = vmatpush1.bf16.msra.mxu0 0
        %1520 = vmatprep.subr.bf16.mxu0 0
        %1521 = vmatpush1.bf16.msra.mxu0 0
        %1522 = vmatprep.subr.bf16.mxu0 0
        %1523 = vmatpush1.bf16.msra.mxu0 0
        %1524 = vmatprep.subr.bf16.mxu0 0
        %1525 = vmatpush1.bf16.msra.mxu0 0
        %1526 = vmatprep.subr.bf16.mxu0 0
        %1527 = vmatpush1.bf16.msra.mxu0 0
        %1528 = vmatprep.subr.bf16.mxu0 0
        %1529 = vmatpush1.bf16.msra.mxu0 0
        %1530 = vmatprep.subr.bf16.mxu0 0
        %1531 = vmatpush1.bf16.msra.mxu0 0
        %1532 = vmatprep.subr.bf16.mxu0 0
        %1533 = vmatpush1.bf16.msra.mxu0 0
        %1534 = vmatprep.mubr.bf16.mxu0 0
        %1535 = vmatmul.mubr.bf16.gmra.mrb[0].mxu0 %v631
        %v1536 = vpop.f32.mrb[0].mxu0
        %v1537 = vadd.f32 %v1472, %v1536
        %v1538 = vpop.f32.mrb[0].mxu0
        %v1539 = vpop.f32.mrb[0].mxu0
        %v1540 = vadd.f32 %v1475, %v1539
        %v1541 = vpop.f32.mrb[0].mxu0
        %1542 = vmatprep.mubr.bf16.mxu0 0
        %1543 = vmatmul.mubr.bf16.gmra.mrb[0].mxu0 %v640
        %v1544 = vpop.f32.mrb[0].mxu0
        %v1545 = vadd.f32 %v1480, %v1544
        %v1546 = vpop.f32.mrb[0].mxu0
        %v1547 = vpop.f32.mrb[0].mxu0
        %v1548 = vadd.f32 %v1483, %v1547
        %v1549 = vpop.f32.mrb[0].mxu0
        %1550 = vmatprep.mubr.bf16.mxu0 0
        %1551 = vmatmul.mubr.bf16.gmra.mrb[0].mxu0 %v649
        %v1552 = vpop.f32.mrb[0].mxu0
        %v1553 = vadd.f32 %v1488, %v1552
        %v1554 = vpop.f32.mrb[0].mxu0
        %v1555 = vpop.f32.mrb[0].mxu0
        %v1556 = vadd.f32 %v1491, %v1555
        %v1557 = vpop.f32.mrb[0].mxu0
        %1558 = vmatprep.mubr.bf16.mxu0 0
        %1559 = vmatmul.mubr.bf16.gmra.mrb[0].mxu0 %v658
        %v1560 = vpop.f32.mrb[0].mxu0
        %v1561 = vadd.f32 %v1496, %v1560
        %v1562 = vpop.f32.mrb[0].mxu0
        %v1563 = vpop.f32.mrb[0].mxu0
        %v1564 = vadd.f32 %v1499, %v1563
        %v1565 = vpop.f32.mrb[0].mxu0
        %1566 = vdwg.mxu0
        %v1567 = vmax.f32 %v1537, 0.0
        %v1568 = vmax.f32 %v1540, 0.0
        %v1569 = vmax.f32 %v1545, 0.0
        %v1570 = vmax.f32 %v1548, 0.0
        %v1571 = vmax.f32 %v1553, 0.0
        %v1572 = vmax.f32 %v1556, 0.0
        %v1573 = vmax.f32 %v1561, 0.0
        %v1574 = vmax.f32 %v1564, 0.0
        %v1575 = vpack.c.bf16 %v1568, %v1567
        %v1576 = vpack.c.bf16 %v1570, %v1569
        %v1577 = vpack.c.bf16 %v1572, %v1571
        %v1578 = vpack.c.bf16 %v1574, %v1573
        %v1579 = vld [vmem:[#allocation8] sm:$0xf]
        %v1580 = vld [vmem:[#allocation8 + $0x4] sm:$0xf]
        %v1581 = vld [vmem:[#allocation8 + $0x8] sm:$0xf]
        %v1582 = vld [vmem:[#allocation8 + $0xc] sm:$0xf]
        %v1583 = vld [vmem:[#allocation8 + $0x10] sm:$0xf]
        %v1584 = vld [vmem:[#allocation8 + $0x14] sm:$0xf]
        %v1585 = vld [vmem:[#allocation8 + $0x18] sm:$0xf]
        %v1586 = vld [vmem:[#allocation8 + $0x1c] sm:$0xf]
        %v1587 = vld [vmem:[#allocation8 + $0x20] sm:$0xf]
        %v1588 = vld [vmem:[#allocation8 + $0x24] sm:$0xf]
        %v1589 = vld [vmem:[#allocation8 + $0x28] sm:$0xf]
        %v1590 = vld [vmem:[#allocation8 + $0x2c] sm:$0xf]
        %v1591 = vld [vmem:[#allocation8 + $0x30] sm:$0xf]
        %v1592 = vld [vmem:[#allocation8 + $0x34] sm:$0xf]
        %v1593 = vld [vmem:[#allocation8 + $0x38] sm:$0xf]
        %v1594 = vld [vmem:[#allocation8 + $0x3c] sm:$0xf]
        %v1595 = vld [vmem:[%s6] sm:$0x1]
        %v1597 = vlaneseq
        %v1598 = vshrl.u32 %v1597, 7
        %v1599 = vsub.s32 0, %v1598
        %v1600 = vrot.slane %v1595, %v1599
        %v1618 = vunpack.c.l.b16 %v1579
        %v1619 = vunpack.c.l.b16 %v1580
        %v1620 = vunpack.c.l.b16 %v1581
        %v1621 = vunpack.c.l.b16 %v1582
        %v1622 = vunpack.c.l.b16 %v1583
        %v1623 = vunpack.c.l.b16 %v1584
        %v1624 = vunpack.c.l.b16 %v1585
        %v1625 = vunpack.c.l.b16 %v1586
        %v1626 = vunpack.c.l.b16 %v1587
        %v1627 = vunpack.c.l.b16 %v1588
        %v1628 = vunpack.c.l.b16 %v1589
        %v1629 = vunpack.c.l.b16 %v1590
        %v1630 = vunpack.c.l.b16 %v1591
        %v1631 = vunpack.c.l.b16 %v1592
        %v1632 = vunpack.c.l.b16 %v1593
        %v1633 = vunpack.c.l.b16 %v1594
        %v1634 = vpack.c.b16 %v1619, %v1618
        %v1635 = vpack.c.b16 %v1621, %v1620
        %v1636 = vpack.c.b16 %v1623, %v1622
        %v1637 = vpack.c.b16 %v1625, %v1624
        %v1638 = vpack.c.b16 %v1627, %v1626
        %v1639 = vpack.c.b16 %v1629, %v1628
        %v1640 = vpack.c.b16 %v1631, %v1630
        %v1641 = vpack.c.b16 %v1633, %v1632
        %1650 = vmatprep.subr.bf16.mxu0 0
        %1651 = vmatpush1.bf16.msra.mxu0 %v1634
        %1652 = vmatprep.subr.bf16.mxu0 0
        %1653 = vmatpush1.bf16.msra.mxu0 %v1635
        %1654 = vmatprep.subr.bf16.mxu0 0
        %1655 = vmatpush1.bf16.msra.mxu0 %v1636
        %1656 = vmatprep.subr.bf16.mxu0 0
        %1657 = vmatpush1.bf16.msra.mxu0 %v1637
        %1658 = vmatprep.subr.bf16.mxu0 0
        %1659 = vmatpush1.bf16.msra.mxu0 %v1638
        %1660 = vmatprep.subr.bf16.mxu0 0
        %1661 = vmatpush1.bf16.msra.mxu0 %v1639
        %1662 = vmatprep.subr.bf16.mxu0 0
        %1663 = vmatpush1.bf16.msra.mxu0 %v1640
        %1664 = vmatprep.subr.bf16.mxu0 0
        %1665 = vmatpush1.bf16.msra.mxu0 %v1641
        %1666 = vmatprep.subr.bf16.mxu0 0
        %1667 = vmatpush1.bf16.msra.mxu0 0
        %1668 = vmatprep.subr.bf16.mxu0 0
        %1669 = vmatpush1.bf16.msra.mxu0 0
        %1670 = vmatprep.subr.bf16.mxu0 0
        %1671 = vmatpush1.bf16.msra.mxu0 0
        %1672 = vmatprep.subr.bf16.mxu0 0
        %1673 = vmatpush1.bf16.msra.mxu0 0
        %1674 = vmatprep.subr.bf16.mxu0 0
        %1675 = vmatpush1.bf16.msra.mxu0 0
        %1676 = vmatprep.subr.bf16.mxu0 0
        %1677 = vmatpush1.bf16.msra.mxu0 0
        %1678 = vmatprep.subr.bf16.mxu0 0
        %1679 = vmatpush1.bf16.msra.mxu0 0
        %1680 = vmatprep.subr.bf16.mxu0 0
        %1681 = vmatpush1.bf16.msra.mxu0 0
        %1682 = vmatprep.mubr.bf16.mxu0 0
        %1683 = vmatmul.mubr.bf16.gmra.mrb[0].mxu0 %v1575
        %v1684 = vpop.f32.mrb[0].mxu0
        %v1685 = vadd.f32 %v1600, %v1684
        %v1686 = vpop.f32.mrb[0].mxu0
        %v1687 = vpop.f32.mrb[0].mxu0
        %v1688 = vadd.f32 %v1600, %v1687
        %v1689 = vpop.f32.mrb[0].mxu0
        %1690 = vmatprep.mubr.bf16.mxu0 0
        %1691 = vmatmul.mubr.bf16.gmra.mrb[0].mxu0 %v1576
        %v1692 = vpop.f32.mrb[0].mxu0
        %v1693 = vadd.f32 %v1600, %v1692
        %v1694 = vpop.f32.mrb[0].mxu0
        %v1695 = vpop.f32.mrb[0].mxu0
        %v1696 = vadd.f32 %v1600, %v1695
        %v1697 = vpop.f32.mrb[0].mxu0
        %1698 = vmatprep.mubr.bf16.mxu0 0
        %1699 = vmatmul.mubr.bf16.gmra.mrb[0].mxu0 %v1577
        %v1700 = vpop.f32.mrb[0].mxu0
        %v1701 = vadd.f32 %v1600, %v1700
        %v1702 = vpop.f32.mrb[0].mxu0
        %v1703 = vpop.f32.mrb[0].mxu0
        %v1704 = vadd.f32 %v1600, %v1703
        %v1705 = vpop.f32.mrb[0].mxu0
        %1706 = vmatprep.mubr.bf16.mxu0 0
        %1707 = vmatmul.mubr.bf16.gmra.mrb[0].mxu0 %v1578
        %v1708 = vpop.f32.mrb[0].mxu0
        %v1709 = vadd.f32 %v1600, %v1708
        %v1710 = vpop.f32.mrb[0].mxu0
        %v1711 = vpop.f32.mrb[0].mxu0
        %v1712 = vadd.f32 %v1600, %v1711
        %v1713 = vpop.f32.mrb[0].mxu0
        %1714 = vdwg.mxu0
        %v1715 = vadd.f32 %v1685, %v342
        %v1716 = vadd.f32 %v1688, %v343
        %v1717 = vadd.f32 %v1693, %v344
        %v1718 = vadd.f32 %v1696, %v345
        %v1719 = vadd.f32 %v1701, %v346
        %v1720 = vadd.f32 %v1704, %v347
        %v1721 = vadd.f32 %v1709, %v348
        %v1722 = vadd.f32 %v1712, %v349
        %1723 = vst [vmem:[%s340] sm:$0xff] %v1715
        %1724 = vst [vmem:[%s340 + $0x8] sm:$0xff] %v1716
        %1725 = vst [vmem:[%s340 + $0x10] sm:$0xff] %v1717
        %1726 = vst [vmem:[%s340 + $0x18] sm:$0xff] %v1718
        %1727 = vst [vmem:[%s340 + $0x20] sm:$0xff] %v1719
        %1728 = vst [vmem:[%s340 + $0x28] sm:$0xff] %v1720
        %1729 = vst [vmem:[%s340 + $0x30] sm:$0xff] %v1721
        %1730 = vst [vmem:[%s340 + $0x38] sm:$0xff] %v1722
        %s1731 = sand.u32 %s186, 1
        %s1732 = scalar_lea.sflag [#allocation4], %s1731
        %s1733 = sand.u32 %s186, 1
        %s1734 = smul.addr %s1733, 64
        %s1735 = scalar_lea.vmem [#allocation10], %s1734
        // Predicated region
        $region65: #{tpu_custom_call.1} parent=47 // pred_check
          %p1736 = pneg %p196
        $region66: #{tpu_custom_call.1} parent=47 // pred_check_branch
          %1738 = sbr.rel (%p1736) target = $region68
        $region67: #{tpu_custom_call.1} parent=47 // pred_region
          %s1740 = ssub.s32 1024, 1024
          %1741 = vsyncadd %s1732, %s1740
          %s1742 = smul.addr %s26, 8
          %s1743 = smul.addr %s1742, 128
          %s1744 = scalar_lea.hbm %s7, %s1743
          %s1745 = sshll.u32 %s1735, 4
          %s1746 = int_to_ptr.vmem [resolvable:$true] %s1745
          %1751 = dma.vmem_to_hbm [thread:$0]  %s1746, 1024, %s1744, %s1732, 128, 128, 8
        $region68: #{tpu_custom_call.1} parent=47 // pred_fallthru
          _
      $region48: #{tpu_custom_call.1} parent=5 // pred_fallthru
        _
      %p1752 = scmp.le.s32.totalorder 2, %s21
      // Predicated region
      $region69: #{tpu_custom_call.1} parent=5 // pred_check
        %p1753 = pneg %p1752
      $region70: #{tpu_custom_call.1} parent=5 // pred_check_branch
        %1755 = sbr.rel (%p1753) target = $region72
      $region71: #{tpu_custom_call.1} parent=5 // pred_region
        %s1756 = ssub.s32 %s21, 2
        // Predicated region
        $region73: #{tpu_custom_call.1} parent=71 // pred_check
          %p1757 = pneg %p202
        $region74: #{tpu_custom_call.1} parent=71 // pred_check_branch
          %1759 = sbr.rel (%p1757) target = $region76
        $region75: #{tpu_custom_call.1} parent=71 // pred_region
          %s1760 = sand.u32 %s187, 1
          %s1761 = scalar_lea.sflag [#allocation4], %s1760
          %s1762 = sand.u32 %s187, 1
          %s1763 = smul.addr %s1762, 64
          %s1764 = scalar_lea.vmem [#allocation10], %s1763
          %1765 = dma.done %s1761, 1024
        $region76: #{tpu_custom_call.1} parent=71 // pred_fallthru
          _
      $region72: #{tpu_custom_call.1} parent=5 // pred_fallthru
        _
    $region6: #{tpu_custom_call.1} parent=1 // loop_footer
      %s25 = sadd.s32 1, %s21
    $region7: #{tpu_custom_call.1} parent=1 // loop_footer_branch
      %20 = sbr.rel target = $region3
    $region8: #{tpu_custom_call.1} parent=1 // loop_exit
      _
    %1766 = vsyncpa [#allocation3], 1
    %s1767 = scalar_lea.sflag [#allocation3], 1
    %1768 = vsyncpa %s1767, 1
    %1769 = vsyncpa [#allocation6], 1
    %1770 = vsyncpa [#allocation9], 1
    %1771 = vsyncpa [#allocation4], 1
    %s1772 = scalar_lea.sflag [#allocation4], 1
    %1773 = vsyncpa %s1772, 1

</llo_original>
